<compile_context>
chip_gen: v7x
topology: tpu7x:2x2x1
jax: 0.10.0
libtpu: 0.0.40
codegen_flags: <defaults>
</compile_context>

<pallas_src>
import jax
import jax.numpy as jnp
from jax import lax
from jax.experimental import pallas as pl
from jax.experimental.pallas import tpu as pltpu


def _saa_kernel(xp_ref, dww_ref, dwb_ref, w1_ref, b1_ref, w2_ref, b2_ref,
                pool_ref, bcast_ref, m_ref, b3w_ref, o_ref, wpad_ref):
    Nb, H, WC = o_ref.shape                 # WC = W * C (lane-dense fast axis)
    C = w1_ref.shape[0]

    # ---- depthwise 3x3 conv (groups=C), pad=1 — lane-dense VPU work ---------
    # xp_ref is the halo-padded input flattened to (Nb, H+2, (W+2)*C); a window
    # shift along W is a lane shift by C inside the padded row.
    acc = jnp.zeros((Nb, H, WC), jnp.float32)
    for di in range(3):
        for dj in range(3):
            tap = di * 3 + dj
            win = xp_ref[:, di:di + H, dj * C:dj * C + WC]        # (Nb, H, WC)
            acc = acc + win * dww_ref[tap:tap + 1, :].reshape(1, 1, WC)
    scale_feat = acc + dwb_ref[...].reshape(1, 1, WC)

    # ---- global average pool -> (Nb, C): sublane reduce + tiny matmul -------
    colsum = jnp.sum(scale_feat, axis=1)                          # (Nb, WC)
    pooled = jnp.dot(colsum, pool_ref[...],
                     preferred_element_type=jnp.float32)          # (Nb, C)

    # ---- channel attention: 1x1 -> relu -> 1x1 -> sigmoid -------------------
    h1 = jnp.maximum(
        jnp.dot(pooled, w1_ref[...],
                preferred_element_type=jnp.float32) + b1_ref[...], 0.0)
    att = jax.nn.sigmoid(
        jnp.dot(h1, w2_ref[...],
                preferred_element_type=jnp.float32) + b2_ref[...])      # (Nb, C)
    att_wide = jnp.dot(att, bcast_ref[...],
                       preferred_element_type=jnp.float32)              # (Nb, WC)
    weighted = scale_feat * att_wide.reshape(Nb, 1, WC)

    # ---- dense 3x3 conv (+ folded BN) as 3 banded (WC x WC) MXU matmuls -----
    # Only a *vertical* halo is needed (horizontal taps / W-edge padding are
    # baked into m_ref). Re-zero just the two border rows each step.
    wpad_ref[:, 0:1, :] = jnp.zeros((Nb, 1, WC), jnp.float32)
    wpad_ref[:, H + 1:H + 2, :] = jnp.zeros((Nb, 1, WC), jnp.float32)
    wpad_ref[:, 1:H + 1, :] = weighted

    enh = jnp.zeros((Nb, H, WC), jnp.float32)
    for di in range(3):
        v = wpad_ref[:, di:di + H, :].reshape(Nb * H, WC)
        enh = enh + jnp.dot(v, m_ref[di],
                            preferred_element_type=jnp.float32).reshape(Nb, H, WC)
    enh = enh + b3w_ref[...].reshape(1, 1, WC)

    # ---- ReLU + residual (x = interior of the padded input block) -----------
    x = xp_ref[:, 1:H + 1, C:C + WC]
    o_ref[...] = (x + jnp.maximum(enh, 0.0)).astype(o_ref.dtype)


def scale_adaptive_attention(x_nchw, params, block_n=None):
    """x_nchw: (N, C, H, W) float32. Returns (N, C, H, W)."""
    # NOTE: the NCHW<->NHWC transposes could be removed entirely by keeping the
    # surrounding model channels-last end-to-end; kept here to match the
    # PyTorch interface.
    x = jnp.transpose(x_nchw, (0, 2, 3, 1)).astype(jnp.float32)   # -> NHWC
    N, H, W, C = x.shape
    C4 = params["w1"].shape[1]
    WC = W * C

    # ---- tiny one-time derived parameters (built outside the kernel) --------
    eye_c = jnp.eye(C, dtype=jnp.float32)
    dww = jnp.tile(params["dw_w"], (1, W))                  # (9, W*C) lane-broadcast taps
    dwb = jnp.tile(params["dw_b"], (1, W))                  # (1, W*C)
    pool_mat = jnp.tile(eye_c, (W, 1)) / float(H * W)       # (W*C, C): mean over (H, W)
    bcast_mat = jnp.tile(eye_c, (1, W))                     # (C, W*C): channel -> lane bcast

    # eval-mode BatchNorm folded into the dense 3x3 conv weights / bias.
    scale_bn = params["bn_gamma"] * lax.rsqrt(params["bn_var"] + 1e-5)     # (1, C)
    w3_bn = params["w3"] * scale_bn.reshape(1, 1, C)                       # (9, Cin, Cout)
    b3_bn = (params["b3"] - params["bn_mean"]) * scale_bn + params["bn_beta"]
    b3w = jnp.tile(b3_bn, (1, W))                                          # (1, W*C)

    # Banded block matrices for the dense conv:
    #   m_band[di, win*C+cin, wout*C+cout] = w3_bn[di*3+dj, cin, cout]
    #   with dj = win - wout + 1 in {0,1,2}, else 0 (implicit zero-pad along W).
    # (O((W*C)^2) per tap-row: fine for moderate W*C; for large images tile W.)
    k = w3_bn.reshape(3, 3, C, C)
    dj = jnp.arange(W)[:, None] - jnp.arange(W)[None, :] + 1               # (W, W)
    valid = ((dj >= 0) & (dj <= 2)).astype(jnp.float32)
    kgather = k[:, jnp.clip(dj, 0, 2), :, :]                               # (3, W, W, C, C)
    m_band = (kgather * valid[None, :, :, None, None]) \
        .transpose(0, 1, 3, 2, 4).reshape(3, WC, WC)

    # Halo-padded input, flattened lane-dense: (N, H+2, (W+2)*C).
    xp = jnp.pad(x, ((0, 0), (1, 1), (1, 1), (0, 0))).reshape(N, H + 2, (W + 2) * C)

    if block_n is None:   # several images per grid step to amortize step overhead
        block_n = max(d for d in range(1, min(N, 8) + 1) if N % d == 0)
    assert N % block_n == 0

    full = lambda shape: pl.BlockSpec(shape, lambda b: (0,) * len(shape))

    out = pl.pallas_call(
        _saa_kernel,
        out_shape=jax.ShapeDtypeStruct((N, H, WC), jnp.float32),
        grid_spec=pltpu.PrefetchScalarGridSpec(
            num_scalar_prefetch=0,
            grid=(N // block_n,),
            in_specs=[
                pl.BlockSpec((block_n, H + 2, (W + 2) * C), lambda b: (b, 0, 0)),  # padded x
                full((9, WC)),        # depthwise weights (lane-broadcast)
                full((1, WC)),        # depthwise bias
                full((C, C4)),        # attention conv1 weight
                full((1, C4)),        # attention conv1 bias
                full((C4, C)),        # attention conv2 weight
                full((1, C)),         # attention conv2 bias
                full((WC, C)),        # pooling matrix
                full((C, WC)),        # channel -> lane broadcast matrix
                full((3, WC, WC)),    # banded conv3x3 (+BN) matrices
                full((1, WC)),        # conv3x3 (+BN) bias (lane-broadcast)
            ],
            out_specs=pl.BlockSpec((block_n, H, WC), lambda b: (b, 0, 0)),
            scratch_shapes=[
                pltpu.VMEM((block_n, H + 2, WC), jnp.float32),   # vertical-halo buffer
            ],
        ),
        compiler_params=pltpu.CompilerParams(
            dimension_semantics=("parallel",)),
    )(xp, dww, dwb, params["w1"], params["b1"], params["w2"], params["b2"],
      pool_mat, bcast_mat, m_band, b3w)

    return jnp.transpose(out.reshape(N, H, W, C), (0, 3, 1, 2))   # -> NCHW


def reference_forward(x_nchw, params):
    """Pure-JAX reference (NHWC internally) for validation."""
    x = jnp.transpose(x_nchw, (0, 2, 3, 1)).astype(jnp.float32)
    N, H, W, C = x.shape
    dn = ("NHWC", "HWIO", "NHWC")

    k_dw = params["dw_w"].reshape(3, 3, C)[:, :, None, :]         # (3,3,1,C)
    scale_feat = lax.conv_general_dilated(
        x, k_dw, (1, 1), "SAME", dimension_numbers=dn,
        feature_group_count=C) + params["dw_b"].reshape(1, 1, 1, C)

    pooled = scale_feat.mean(axis=(1, 2))                         # (N, C)
    h1 = jnp.maximum(pooled @ params["w1"] + params["b1"], 0.0)
    att = jax.nn.sigmoid(h1 @ params["w2"] + params["b2"])        # (N, C)
    weighted = scale_feat * att[:, None, None, :]

    k3 = params["w3"].reshape(3, 3, C, C)
    enh = lax.conv_general_dilated(
        weighted, k3, (1, 1), "SAME",
        dimension_numbers=dn) + params["b3"].reshape(1, 1, 1, C)

    inv = lax.rsqrt(params["bn_var"] + 1e-5)
    y = (enh - params["bn_mean"].reshape(1, 1, 1, C)) * inv.reshape(1, 1, 1, C) \
        * params["bn_gamma"].reshape(1, 1, 1, C) + params["bn_beta"].reshape(1, 1, 1, C)
    y = jnp.maximum(y, 0.0)
    return jnp.transpose(x + y, (0, 3, 1, 2))


def init_params(key, C):
    """Deterministic synthetic parameters (shapes follow nn.Module __init__)."""
    C4 = C // 4
    ks = jax.random.split(key, 12)
    p = {
        # depthwise 3x3, stored as (tap=di*3+dj, channel)
        "dw_w": 0.1 * jax.random.normal(ks[0], (9, C), jnp.float32),
        "dw_b": 0.1 * jax.random.normal(ks[1], (1, C), jnp.float32),
        # 1x1 conv C -> C//4 (weight stored as (in, out))
        "w1": 0.2 * jax.random.normal(ks[2], (C, C4), jnp.float32),
        "b1": 0.1 * jax.random.normal(ks[3], (1, C4), jnp.float32),
        # 1x1 conv C//4 -> C
        "w2": 0.2 * jax.random.normal(ks[4], (C4, C), jnp.float32),
        "b2": 0.1 * jax.random.normal(ks[5], (1, C), jnp.float32),
        # dense 3x3 conv C -> C, stored as (tap, c_in, c_out)
        "w3": 0.1 * jax.random.normal(ks[6], (9, C, C), jnp.float32),
        "b3": 0.1 * jax.random.normal(ks[7], (1, C), jnp.float32),
        # BatchNorm (eval-mode statistics)
        "bn_gamma": 1.0 + 0.1 * jax.random.normal(ks[8], (1, C), jnp.float32),
        "bn_beta": 0.1 * jax.random.normal(ks[9], (1, C), jnp.float32),
        "bn_mean": 0.1 * jax.random.normal(ks[10], (1, C), jnp.float32),
        "bn_var": 1.0 + 0.1 * jax.random.uniform(ks[11], (1, C), jnp.float32),
    }
    return p


if __name__ == "__main__":
    # C=8, W=16 -> W*C = 128: a full 128-lane fast axis inside the kernel.
    N, C, H, W = 2, 8, 16, 16
    key = jax.random.PRNGKey(0)
    kx, kp = jax.random.split(key)
    x = jax.random.normal(kx, (N, C, H, W), jnp.float32)
    params = init_params(kp, C)

    out = jax.block_until_ready(scale_adaptive_attention(x, params))
    ref = jax.block_until_ready(reference_forward(x, params))

    assert out.shape == (N, C, H, W)
    max_diff = jnp.max(jnp.abs(out - ref))
    assert jnp.allclose(out, ref, atol=1e-4, rtol=1e-4), \
        f"max abs diff {max_diff}"

    print("KERNEL_OK")
</pallas_src>

<mosaic_0001>
module attributes {stable_mosaic.version = 11 : i64} {
  func.func @_saa_kernel(%arg0: i32, %arg1: memref<2x18x144xf32, #tpu.memory_space<vmem>>, %arg2: memref<9x128xf32, #tpu.memory_space<vmem>>, %arg3: memref<1x128xf32, #tpu.memory_space<vmem>>, %arg4: memref<8x2xf32, #tpu.memory_space<vmem>>, %arg5: memref<1x2xf32, #tpu.memory_space<vmem>>, %arg6: memref<2x8xf32, #tpu.memory_space<vmem>>, %arg7: memref<1x8xf32, #tpu.memory_space<vmem>>, %arg8: memref<128x8xf32, #tpu.memory_space<vmem>>, %arg9: memref<8x128xf32, #tpu.memory_space<vmem>>, %arg10: memref<3x128x128xf32, #tpu.memory_space<vmem>>, %arg11: memref<1x128xf32, #tpu.memory_space<vmem>>, %arg12: memref<2x16x128xf32, #tpu.memory_space<vmem>>, %arg13: memref<2x18x128xf32, #tpu.memory_space<vmem>>) attributes {dimension_semantics = [#tpu.dimension_semantics<parallel>], iteration_bounds = array<i64: 1>, scalar_prefetch = 0 : i64, scratch_operands = 1 : i64, tpu.core_type = #tpu.core_type<tc>, window_params = [{transform_indices = @transform_0, window_bounds = array<i64: 2, 18, 144>}, {pipeline_mode = #tpu.pipeline_mode<synchronous>, transform_indices = @transform_1, window_bounds = array<i64: 9, 128>}, {pipeline_mode = #tpu.pipeline_mode<synchronous>, transform_indices = @transform_2, window_bounds = array<i64: 1, 128>}, {pipeline_mode = #tpu.pipeline_mode<synchronous>, transform_indices = @transform_3, window_bounds = array<i64: 8, 2>}, {pipeline_mode = #tpu.pipeline_mode<synchronous>, transform_indices = @transform_4, window_bounds = array<i64: 1, 2>}, {pipeline_mode = #tpu.pipeline_mode<synchronous>, transform_indices = @transform_5, window_bounds = array<i64: 2, 8>}, {pipeline_mode = #tpu.pipeline_mode<synchronous>, transform_indices = @transform_6, window_bounds = array<i64: 1, 8>}, {pipeline_mode = #tpu.pipeline_mode<synchronous>, transform_indices = @transform_7, window_bounds = array<i64: 128, 8>}, {pipeline_mode = #tpu.pipeline_mode<synchronous>, transform_indices = @transform_8, window_bounds = array<i64: 8, 128>}, {pipeline_mode = #tpu.pipeline_mode<synchronous>, transform_indices = @transform_9, window_bounds = array<i64: 3, 128, 128>}, {pipeline_mode = #tpu.pipeline_mode<synchronous>, transform_indices = @transform_10, window_bounds = array<i64: 1, 128>}, {transform_indices = @transform_11, window_bounds = array<i64: 2, 16, 128>}]} {
    %cst = arith.constant 0.000000e+00 : f32
    %0 = vector.broadcast %cst : f32 to vector<2x16x128xf32>
    %c0 = arith.constant 0 : index
    %c0_0 = arith.constant 0 : index
    %c0_1 = arith.constant 0 : index
    %1 = vector.load %arg1[%c0, %c0_0, %c0_1] : memref<2x18x144xf32, #tpu.memory_space<vmem>>, vector<2x16x128xf32>
    %c0_2 = arith.constant 0 : index
    %c0_3 = arith.constant 0 : index
    %2 = vector.load %arg2[%c0_2, %c0_3] : memref<9x128xf32, #tpu.memory_space<vmem>>, vector<1x128xf32>
    %3 = vector.shape_cast %2 : vector<1x128xf32> to vector<1x1x128xf32>
    %4 = vector.broadcast %3 : vector<1x1x128xf32> to vector<2x16x128xf32>
    %5 = arith.mulf %1, %4 : vector<2x16x128xf32>
    %6 = arith.addf %0, %5 : vector<2x16x128xf32>
    %c0_4 = arith.constant 0 : index
    %c0_5 = arith.constant 0 : index
    %c8 = arith.constant 8 : index
    %7 = vector.load %arg1[%c0_4, %c0_5, %c8] : memref<2x18x144xf32, #tpu.memory_space<vmem>>, vector<2x16x128xf32>
    %c1 = arith.constant 1 : index
    %c0_6 = arith.constant 0 : index
    %8 = vector.load %arg2[%c1, %c0_6] : memref<9x128xf32, #tpu.memory_space<vmem>>, vector<1x128xf32>
    %9 = vector.shape_cast %8 : vector<1x128xf32> to vector<1x1x128xf32>
    %10 = vector.broadcast %9 : vector<1x1x128xf32> to vector<2x16x128xf32>
    %11 = arith.mulf %7, %10 : vector<2x16x128xf32>
    %12 = arith.addf %6, %11 : vector<2x16x128xf32>
    %c0_7 = arith.constant 0 : index
    %c0_8 = arith.constant 0 : index
    %c16 = arith.constant 16 : index
    %13 = vector.load %arg1[%c0_7, %c0_8, %c16] : memref<2x18x144xf32, #tpu.memory_space<vmem>>, vector<2x16x128xf32>
    %c2 = arith.constant 2 : index
    %c0_9 = arith.constant 0 : index
    %14 = vector.load %arg2[%c2, %c0_9] : memref<9x128xf32, #tpu.memory_space<vmem>>, vector<1x128xf32>
    %15 = vector.shape_cast %14 : vector<1x128xf32> to vector<1x1x128xf32>
    %16 = vector.broadcast %15 : vector<1x1x128xf32> to vector<2x16x128xf32>
    %17 = arith.mulf %13, %16 : vector<2x16x128xf32>
    %18 = arith.addf %12, %17 : vector<2x16x128xf32>
    %c0_10 = arith.constant 0 : index
    %c1_11 = arith.constant 1 : index
    %c0_12 = arith.constant 0 : index
    %19 = vector.load %arg1[%c0_10, %c1_11, %c0_12] : memref<2x18x144xf32, #tpu.memory_space<vmem>>, vector<2x16x128xf32>
    %c3 = arith.constant 3 : index
    %c0_13 = arith.constant 0 : index
    %20 = vector.load %arg2[%c3, %c0_13] : memref<9x128xf32, #tpu.memory_space<vmem>>, vector<1x128xf32>
    %21 = vector.shape_cast %20 : vector<1x128xf32> to vector<1x1x128xf32>
    %22 = vector.broadcast %21 : vector<1x1x128xf32> to vector<2x16x128xf32>
    %23 = arith.mulf %19, %22 : vector<2x16x128xf32>
    %24 = arith.addf %18, %23 : vector<2x16x128xf32>
    %c0_14 = arith.constant 0 : index
    %c1_15 = arith.constant 1 : index
    %c8_16 = arith.constant 8 : index
    %25 = vector.load %arg1[%c0_14, %c1_15, %c8_16] : memref<2x18x144xf32, #tpu.memory_space<vmem>>, vector<2x16x128xf32>
    %c4 = arith.constant 4 : index
    %c0_17 = arith.constant 0 : index
    %26 = vector.load %arg2[%c4, %c0_17] : memref<9x128xf32, #tpu.memory_space<vmem>>, vector<1x128xf32>
    %27 = vector.shape_cast %26 : vector<1x128xf32> to vector<1x1x128xf32>
    %28 = vector.broadcast %27 : vector<1x1x128xf32> to vector<2x16x128xf32>
    %29 = arith.mulf %25, %28 : vector<2x16x128xf32>
    %30 = arith.addf %24, %29 : vector<2x16x128xf32>
    %c0_18 = arith.constant 0 : index
    %c1_19 = arith.constant 1 : index
    %c16_20 = arith.constant 16 : index
    %31 = vector.load %arg1[%c0_18, %c1_19, %c16_20] : memref<2x18x144xf32, #tpu.memory_space<vmem>>, vector<2x16x128xf32>
    %c5 = arith.constant 5 : index
    %c0_21 = arith.constant 0 : index
    %32 = vector.load %arg2[%c5, %c0_21] : memref<9x128xf32, #tpu.memory_space<vmem>>, vector<1x128xf32>
    %33 = vector.shape_cast %32 : vector<1x128xf32> to vector<1x1x128xf32>
    %34 = vector.broadcast %33 : vector<1x1x128xf32> to vector<2x16x128xf32>
    %35 = arith.mulf %31, %34 : vector<2x16x128xf32>
    %36 = arith.addf %30, %35 : vector<2x16x128xf32>
    %c0_22 = arith.constant 0 : index
    %c2_23 = arith.constant 2 : index
    %c0_24 = arith.constant 0 : index
    %37 = vector.load %arg1[%c0_22, %c2_23, %c0_24] : memref<2x18x144xf32, #tpu.memory_space<vmem>>, vector<2x16x128xf32>
    %c6 = arith.constant 6 : index
    %c0_25 = arith.constant 0 : index
    %38 = vector.load %arg2[%c6, %c0_25] : memref<9x128xf32, #tpu.memory_space<vmem>>, vector<1x128xf32>
    %39 = vector.shape_cast %38 : vector<1x128xf32> to vector<1x1x128xf32>
    %40 = vector.broadcast %39 : vector<1x1x128xf32> to vector<2x16x128xf32>
    %41 = arith.mulf %37, %40 : vector<2x16x128xf32>
    %42 = arith.addf %36, %41 : vector<2x16x128xf32>
    %c0_26 = arith.constant 0 : index
    %c2_27 = arith.constant 2 : index
    %c8_28 = arith.constant 8 : index
    %43 = vector.load %arg1[%c0_26, %c2_27, %c8_28] : memref<2x18x144xf32, #tpu.memory_space<vmem>>, vector<2x16x128xf32>
    %c7 = arith.constant 7 : index
    %c0_29 = arith.constant 0 : index
    %44 = vector.load %arg2[%c7, %c0_29] : memref<9x128xf32, #tpu.memory_space<vmem>>, vector<1x128xf32>
    %45 = vector.shape_cast %44 : vector<1x128xf32> to vector<1x1x128xf32>
    %46 = vector.broadcast %45 : vector<1x1x128xf32> to vector<2x16x128xf32>
    %47 = arith.mulf %43, %46 : vector<2x16x128xf32>
    %48 = arith.addf %42, %47 : vector<2x16x128xf32>
    %c0_30 = arith.constant 0 : index
    %c2_31 = arith.constant 2 : index
    %c16_32 = arith.constant 16 : index
    %49 = vector.load %arg1[%c0_30, %c2_31, %c16_32] : memref<2x18x144xf32, #tpu.memory_space<vmem>>, vector<2x16x128xf32>
    %c8_33 = arith.constant 8 : index
    %c0_34 = arith.constant 0 : index
    %50 = vector.load %arg2[%c8_33, %c0_34] : memref<9x128xf32, #tpu.memory_space<vmem>>, vector<1x128xf32>
    %51 = vector.shape_cast %50 : vector<1x128xf32> to vector<1x1x128xf32>
    %52 = vector.broadcast %51 : vector<1x1x128xf32> to vector<2x16x128xf32>
    %53 = arith.mulf %49, %52 : vector<2x16x128xf32>
    %54 = arith.addf %48, %53 : vector<2x16x128xf32>
    %c0_35 = arith.constant 0 : index
    %c0_36 = arith.constant 0 : index
    %55 = vector.load %arg3[%c0_35, %c0_36] : memref<1x128xf32, #tpu.memory_space<vmem>>, vector<1x128xf32>
    %56 = vector.shape_cast %55 : vector<1x128xf32> to vector<1x1x128xf32>
    %57 = vector.broadcast %56 : vector<1x1x128xf32> to vector<2x16x128xf32>
    %58 = arith.addf %54, %57 : vector<2x16x128xf32>
    %cst_37 = arith.constant dense<0.000000e+00> : vector<2x128xf32>
    %59 = vector.multi_reduction <add>, %58, %cst_37 [1] : vector<2x16x128xf32> to vector<2x128xf32>
    %c0_38 = arith.constant 0 : index
    %c0_39 = arith.constant 0 : index
    %60 = vector.load %arg8[%c0_38, %c0_39] : memref<128x8xf32, #tpu.memory_space<vmem>>, vector<128x8xf32>
    %cst_40 = arith.constant dense<0.000000e+00> : vector<2x8xf32>
    %61 = tpu.matmul %59, %60, %cst_40 {dimension_numbers = #tpu.dot_dimension_numbers<[1], [0], [0], [1], [0, 0, 1, 1], [], []>} : vector<2x128xf32>, vector<128x8xf32>, vector<2x8xf32> -> vector<2x8xf32>
    %c0_41 = arith.constant 0 : index
    %c0_42 = arith.constant 0 : index
    %62 = vector.load %arg4[%c0_41, %c0_42] : memref<8x2xf32, #tpu.memory_space<vmem>>, vector<8x2xf32>
    %cst_43 = arith.constant dense<0.000000e+00> : vector<2x2xf32>
    %63 = tpu.matmul %61, %62, %cst_43 {dimension_numbers = #tpu.dot_dimension_numbers<[1], [0], [0], [1], [0, 0, 1, 1], [], []>} : vector<2x8xf32>, vector<8x2xf32>, vector<2x2xf32> -> vector<2x2xf32>
    %c0_44 = arith.constant 0 : index
    %c0_45 = arith.constant 0 : index
    %64 = vector.load %arg5[%c0_44, %c0_45] : memref<1x2xf32, #tpu.memory_space<vmem>>, vector<1x2xf32>
    %65 = vector.broadcast %64 : vector<1x2xf32> to vector<2x2xf32>
    %66 = arith.addf %63, %65 : vector<2x2xf32>
    %cst_46 = arith.constant 0.000000e+00 : f32
    %67 = vector.broadcast %cst_46 : f32 to vector<2x2xf32>
    %68 = arith.maximumf %66, %67 : vector<2x2xf32>
    %c0_47 = arith.constant 0 : index
    %c0_48 = arith.constant 0 : index
    %69 = vector.load %arg6[%c0_47, %c0_48] : memref<2x8xf32, #tpu.memory_space<vmem>>, vector<2x8xf32>
    %cst_49 = arith.constant dense<0.000000e+00> : vector<2x8xf32>
    %70 = tpu.matmul %68, %69, %cst_49 {dimension_numbers = #tpu.dot_dimension_numbers<[1], [0], [0], [1], [0, 0, 1, 1], [], []>} : vector<2x2xf32>, vector<2x8xf32>, vector<2x8xf32> -> vector<2x8xf32>
    %c0_50 = arith.constant 0 : index
    %c0_51 = arith.constant 0 : index
    %71 = vector.load %arg7[%c0_50, %c0_51] : memref<1x8xf32, #tpu.memory_space<vmem>>, vector<1x8xf32>
    %72 = vector.broadcast %71 : vector<1x8xf32> to vector<2x8xf32>
    %73 = arith.addf %70, %72 : vector<2x8xf32>
    %74 = arith.negf %73 : vector<2x8xf32>
    %75 = math.exp %74 : vector<2x8xf32>
    %cst_52 = arith.constant 1.000000e+00 : f32
    %76 = vector.broadcast %cst_52 : f32 to vector<2x8xf32>
    %77 = arith.addf %76, %75 : vector<2x8xf32>
    %78 = arith.divf %76, %77 : vector<2x8xf32>
    %c0_53 = arith.constant 0 : index
    %c0_54 = arith.constant 0 : index
    %79 = vector.load %arg9[%c0_53, %c0_54] : memref<8x128xf32, #tpu.memory_space<vmem>>, vector<8x128xf32>
    %cst_55 = arith.constant dense<0.000000e+00> : vector<2x128xf32>
    %80 = tpu.matmul %78, %79, %cst_55 {dimension_numbers = #tpu.dot_dimension_numbers<[1], [0], [0], [1], [0, 0, 1, 1], [], []>} : vector<2x8xf32>, vector<8x128xf32>, vector<2x128xf32> -> vector<2x128xf32>
    %81 = vector.shape_cast %80 : vector<2x128xf32> to vector<2x1x128xf32>
    %82 = vector.broadcast %81 : vector<2x1x128xf32> to vector<2x16x128xf32>
    %83 = arith.mulf %58, %82 : vector<2x16x128xf32>
    %cst_56 = arith.constant 0.000000e+00 : f32
    %84 = vector.broadcast %cst_56 : f32 to vector<2x1x128xf32>
    %c0_57 = arith.constant 0 : index
    %c0_58 = arith.constant 0 : index
    %c0_59 = arith.constant 0 : index
    %85 = vector.load %arg13[%c0_57, %c0_58, %c0_59] : memref<2x18x128xf32, #tpu.memory_space<vmem>>, vector<2x1x128xf32>
    tpu.vector_store %arg13[%c0_57, %c0_58, %c0_59], %84 {strides = array<i32>} : memref<2x18x128xf32, #tpu.memory_space<vmem>>, vector<2x1x128xf32>,
    %cst_60 = arith.constant 0.000000e+00 : f32
    %86 = vector.broadcast %cst_60 : f32 to vector<2x1x128xf32>
    %c0_61 = arith.constant 0 : index
    %c17 = arith.constant 17 : index
    %c0_62 = arith.constant 0 : index
    %87 = vector.load %arg13[%c0_61, %c17, %c0_62] : memref<2x18x128xf32, #tpu.memory_space<vmem>>, vector<2x1x128xf32>
    tpu.vector_store %arg13[%c0_61, %c17, %c0_62], %86 {strides = array<i32>} : memref<2x18x128xf32, #tpu.memory_space<vmem>>, vector<2x1x128xf32>,
    %c0_63 = arith.constant 0 : index
    %c1_64 = arith.constant 1 : index
    %c0_65 = arith.constant 0 : index
    %88 = vector.load %arg13[%c0_63, %c1_64, %c0_65] : memref<2x18x128xf32, #tpu.memory_space<vmem>>, vector<2x16x128xf32>
    tpu.vector_store %arg13[%c0_63, %c1_64, %c0_65], %83 {strides = array<i32>} : memref<2x18x128xf32, #tpu.memory_space<vmem>>, vector<2x16x128xf32>,
    %cst_66 = arith.constant 0.000000e+00 : f32
    %89 = vector.broadcast %cst_66 : f32 to vector<2x16x128xf32>
    %c0_67 = arith.constant 0 : index
    %c0_68 = arith.constant 0 : index
    %c0_69 = arith.constant 0 : index
    %90 = vector.load %arg13[%c0_67, %c0_68, %c0_69] : memref<2x18x128xf32, #tpu.memory_space<vmem>>, vector<2x16x128xf32>
    %91 = vector.shape_cast %90 : vector<2x16x128xf32> to vector<32x128xf32>
    %c0_70 = arith.constant 0 : index
    %c0_71 = arith.constant 0 : index
    %c0_72 = arith.constant 0 : index
    %92 = vector.load %arg10[%c0_70, %c0_71, %c0_72] : memref<3x128x128xf32, #tpu.memory_space<vmem>>, vector<1x128x128xf32>
    %93 = vector.shape_cast %92 : vector<1x128x128xf32> to vector<128x128xf32>
    %cst_73 = arith.constant dense<0.000000e+00> : vector<32x128xf32>
    %94 = tpu.matmul %91, %93, %cst_73 {dimension_numbers = #tpu.dot_dimension_numbers<[1], [0], [0], [1], [0, 0, 1, 1], [], []>} : vector<32x128xf32>, vector<128x128xf32>, vector<32x128xf32> -> vector<32x128xf32>
    %95 = vector.shape_cast %94 : vector<32x128xf32> to vector<2x16x128xf32>
    %96 = arith.addf %89, %95 : vector<2x16x128xf32>
    %c0_74 = arith.constant 0 : index
    %c1_75 = arith.constant 1 : index
    %c0_76 = arith.constant 0 : index
    %97 = vector.load %arg13[%c0_74, %c1_75, %c0_76] : memref<2x18x128xf32, #tpu.memory_space<vmem>>, vector<2x16x128xf32>
    %98 = vector.shape_cast %97 : vector<2x16x128xf32> to vector<32x128xf32>
    %c1_77 = arith.constant 1 : index
    %c0_78 = arith.constant 0 : index
    %c0_79 = arith.constant 0 : index
    %99 = vector.load %arg10[%c1_77, %c0_78, %c0_79] : memref<3x128x128xf32, #tpu.memory_space<vmem>>, vector<1x128x128xf32>
    %100 = vector.shape_cast %99 : vector<1x128x128xf32> to vector<128x128xf32>
    %cst_80 = arith.constant dense<0.000000e+00> : vector<32x128xf32>
    %101 = tpu.matmul %98, %100, %cst_80 {dimension_numbers = #tpu.dot_dimension_numbers<[1], [0], [0], [1], [0, 0, 1, 1], [], []>} : vector<32x128xf32>, vector<128x128xf32>, vector<32x128xf32> -> vector<32x128xf32>
    %102 = vector.shape_cast %101 : vector<32x128xf32> to vector<2x16x128xf32>
    %103 = arith.addf %96, %102 : vector<2x16x128xf32>
    %c0_81 = arith.constant 0 : index
    %c2_82 = arith.constant 2 : index
    %c0_83 = arith.constant 0 : index
    %104 = vector.load %arg13[%c0_81, %c2_82, %c0_83] : memref<2x18x128xf32, #tpu.memory_space<vmem>>, vector<2x16x128xf32>
    %105 = vector.shape_cast %104 : vector<2x16x128xf32> to vector<32x128xf32>
    %c2_84 = arith.constant 2 : index
    %c0_85 = arith.constant 0 : index
    %c0_86 = arith.constant 0 : index
    %106 = vector.load %arg10[%c2_84, %c0_85, %c0_86] : memref<3x128x128xf32, #tpu.memory_space<vmem>>, vector<1x128x128xf32>
    %107 = vector.shape_cast %106 : vector<1x128x128xf32> to vector<128x128xf32>
    %cst_87 = arith.constant dense<0.000000e+00> : vector<32x128xf32>
    %108 = tpu.matmul %105, %107, %cst_87 {dimension_numbers = #tpu.dot_dimension_numbers<[1], [0], [0], [1], [0, 0, 1, 1], [], []>} : vector<32x128xf32>, vector<128x128xf32>, vector<32x128xf32> -> vector<32x128xf32>
    %109 = vector.shape_cast %108 : vector<32x128xf32> to vector<2x16x128xf32>
    %110 = arith.addf %103, %109 : vector<2x16x128xf32>
    %c0_88 = arith.constant 0 : index
    %c0_89 = arith.constant 0 : index
    %111 = vector.load %arg11[%c0_88, %c0_89] : memref<1x128xf32, #tpu.memory_space<vmem>>, vector<1x128xf32>
    %112 = vector.shape_cast %111 : vector<1x128xf32> to vector<1x1x128xf32>
    %113 = vector.broadcast %112 : vector<1x1x128xf32> to vector<2x16x128xf32>
    %114 = arith.addf %110, %113 : vector<2x16x128xf32>
    %c0_90 = arith.constant 0 : index
    %c1_91 = arith.constant 1 : index
    %c8_92 = arith.constant 8 : index
    %115 = vector.load %arg1[%c0_90, %c1_91, %c8_92] : memref<2x18x144xf32, #tpu.memory_space<vmem>>, vector<2x16x128xf32>
    %cst_93 = arith.constant 0.000000e+00 : f32
    %116 = vector.broadcast %cst_93 : f32 to vector<2x16x128xf32>
    %117 = arith.maximumf %114, %116 : vector<2x16x128xf32>
    %118 = arith.addf %115, %117 : vector<2x16x128xf32>
    %c0_94 = arith.constant 0 : index
    %c0_95 = arith.constant 0 : index
    %c0_96 = arith.constant 0 : index
    %119 = vector.load %arg12[%c0_94, %c0_95, %c0_96] : memref<2x16x128xf32, #tpu.memory_space<vmem>>, vector<2x16x128xf32>
    tpu.vector_store %arg12[%c0_94, %c0_95, %c0_96], %118 {strides = array<i32>} : memref<2x16x128xf32, #tpu.memory_space<vmem>>, vector<2x16x128xf32>,
    return
  }
  func.func @transform_0(%arg0: i32) -> (i32, i32, i32) {
    %c0_i32 = arith.constant 0 : i32
    %c0_i32_0 = arith.constant 0 : i32
    %c0_i32_1 = arith.constant 0 : i32
    return %arg0, %c0_i32, %c0_i32_0 : i32, i32, i32
  }
  func.func @transform_1(%arg0: i32) -> (i32, i32) {
    %c0_i32 = arith.constant 0 : i32
    %c0_i32_0 = arith.constant 0 : i32
    %c0_i32_1 = arith.constant 0 : i32
    return %c0_i32, %c0_i32_0 : i32, i32
  }
  func.func @transform_2(%arg0: i32) -> (i32, i32) {
    %c0_i32 = arith.constant 0 : i32
    %c0_i32_0 = arith.constant 0 : i32
    %c0_i32_1 = arith.constant 0 : i32
    return %c0_i32, %c0_i32_0 : i32, i32
  }
  func.func @transform_3(%arg0: i32) -> (i32, i32) {
    %c0_i32 = arith.constant 0 : i32
    %c0_i32_0 = arith.constant 0 : i32
    %c0_i32_1 = arith.constant 0 : i32
    return %c0_i32, %c0_i32_0 : i32, i32
  }
  func.func @transform_4(%arg0: i32) -> (i32, i32) {
    %c0_i32 = arith.constant 0 : i32
    %c0_i32_0 = arith.constant 0 : i32
    %c0_i32_1 = arith.constant 0 : i32
    return %c0_i32, %c0_i32_0 : i32, i32
  }
  func.func @transform_5(%arg0: i32) -> (i32, i32) {
    %c0_i32 = arith.constant 0 : i32
    %c0_i32_0 = arith.constant 0 : i32
    %c0_i32_1 = arith.constant 0 : i32
    return %c0_i32, %c0_i32_0 : i32, i32
  }
  func.func @transform_6(%arg0: i32) -> (i32, i32) {
    %c0_i32 = arith.constant 0 : i32
    %c0_i32_0 = arith.constant 0 : i32
    %c0_i32_1 = arith.constant 0 : i32
    return %c0_i32, %c0_i32_0 : i32, i32
  }
  func.func @transform_7(%arg0: i32) -> (i32, i32) {
    %c0_i32 = arith.constant 0 : i32
    %c0_i32_0 = arith.constant 0 : i32
    %c0_i32_1 = arith.constant 0 : i32
    return %c0_i32, %c0_i32_0 : i32, i32
  }
  func.func @transform_8(%arg0: i32) -> (i32, i32) {
    %c0_i32 = arith.constant 0 : i32
    %c0_i32_0 = arith.constant 0 : i32
    %c0_i32_1 = arith.constant 0 : i32
    return %c0_i32, %c0_i32_0 : i32, i32
  }
  func.func @transform_9(%arg0: i32) -> (i32, i32, i32) {
    %c0_i32 = arith.constant 0 : i32
    %c0_i32_0 = arith.constant 0 : i32
    %c0_i32_1 = arith.constant 0 : i32
    %c0_i32_2 = arith.constant 0 : i32
    return %c0_i32, %c0_i32_0, %c0_i32_1 : i32, i32, i32
  }
  func.func @transform_10(%arg0: i32) -> (i32, i32) {
    %c0_i32 = arith.constant 0 : i32
    %c0_i32_0 = arith.constant 0 : i32
    %c0_i32_1 = arith.constant 0 : i32
    return %c0_i32, %c0_i32_0 : i32, i32
  }
  func.func @transform_11(%arg0: i32) -> (i32, i32, i32) {
    %c0_i32 = arith.constant 0 : i32
    %c0_i32_0 = arith.constant 0 : i32
    %c0_i32_1 = arith.constant 0 : i32
    return %arg0, %c0_i32, %c0_i32_0 : i32, i32, i32
  }
}

</mosaic_0001>

<llo_original>
// kernel: tpu_custom_call.1
$region0: #{tpu_custom_call.1}
  #allocation0 [shape = 'u32[]', space=smem, size = 0x4, offset = 0x4, fixed_abs, tag = 'smem constant byte address 0x4 - core index']
  #allocation1 [shape = 'u32[144,128]{1,0:T(1,128)}', space=vmem, size = 0x12000, scoped, tag = 'internal scratch']
  #allocation2 [shape = 'f32[2,18,128]{2,1,0:T(8,128)}', space=vmem, size = 0x6000, scoped, tag = 'scratch operand']
  %s0 = inlined_call_operand.vmem [shape: f32[2,18,144], index: 0, kind: input, shape index: {}]
  %s1 = inlined_call_operand.vmem [shape: f32[9,128], index: 1, kind: input, shape index: {}]
  %s2 = inlined_call_operand.vmem [shape: f32[1,128], index: 2, kind: input, shape index: {}]
  %s3 = inlined_call_operand.vmem [shape: f32[8,2], index: 3, kind: input, shape index: {}]
  %s4 = inlined_call_operand.vmem [shape: f32[1,2], index: 4, kind: input, shape index: {}]
  %s5 = inlined_call_operand.vmem [shape: f32[2,8], index: 5, kind: input, shape index: {}]
  %s6 = inlined_call_operand.vmem [shape: f32[1,8], index: 6, kind: input, shape index: {}]
  %s7 = inlined_call_operand.vmem [shape: f32[128,8], index: 7, kind: input, shape index: {}]
  %s8 = inlined_call_operand.vmem [shape: f32[8,128], index: 8, kind: input, shape index: {}]
  %s9 = inlined_call_operand.hbm [shape: f32[3,128,128], index: 9, kind: input, shape index: {}]
  %s10 = inlined_call_operand.vmem [shape: f32[1,128], index: 10, kind: input, shape index: {}]
  %s11 = inlined_call_operand.hbm [shape: f32[2,16,128], index: 11, kind: output, shape index: {}]
  %s12 = sld [smem:[#allocation0]]
  $region58: #{tpu_custom_call.1} parent=0
    _
  %s14 = ssub.s32 1, %s12
  %s15 = scalar_select 0, %s14, %s12
  $region1: #{tpu_custom_call.1} parent=0
    #allocation3 [shape = 'u8[196608]{0}', space=vmem, size = 0x30000, scoped, tag = 'input window, operand 9, single buffered']
    #allocation4 [shape = 's32[1]{0}', space=sflag, size = 0x4, scoped, tag = 'scoped memory for tpu_custom_call.1']
    #allocation5 [shape = 's32[1]{0}', space=sflag, size = 0x4, scoped, tag = 'scoped memory for tpu_custom_call.1']
    #allocation6 [shape = 'u8[16384]{0}', space=vmem, size = 0x4000, scoped, tag = 'output window, operand 0, single buffered']
    %16 = vsyncpa [#allocation4], 0
    %17 = vsyncpa [#allocation5], 0
    // Predicated region
    $region2: #{tpu_custom_call.1} parent=1 // pred_check
      _
    $region3: #{tpu_custom_call.1} parent=1 // pred_check_branch
      %19 = sbr.rel (0) target = $region5
    $region4: #{tpu_custom_call.1} parent=1 // pred_region
      _
    $region5: #{tpu_custom_call.1} parent=1 // pred_fallthru
      _
    // Predicated region
    $region6: #{tpu_custom_call.1} parent=1 // pred_check
      _
    $region7: #{tpu_custom_call.1} parent=1 // pred_check_branch
      %21 = sbr.rel (0) target = $region9
    $region8: #{tpu_custom_call.1} parent=1 // pred_region
      _
    $region9: #{tpu_custom_call.1} parent=1 // pred_fallthru
      _
    // Predicated region
    $region10: #{tpu_custom_call.1} parent=1 // pred_check
      _
    $region11: #{tpu_custom_call.1} parent=1 // pred_check_branch
      %23 = sbr.rel (0) target = $region13
    $region12: #{tpu_custom_call.1} parent=1 // pred_region
      _
    $region13: #{tpu_custom_call.1} parent=1 // pred_fallthru
      _
    // Predicated region
    $region14: #{tpu_custom_call.1} parent=1 // pred_check
      _
    $region15: #{tpu_custom_call.1} parent=1 // pred_check_branch
      %25 = sbr.rel (0) target = $region17
    $region16: #{tpu_custom_call.1} parent=1 // pred_region
      _
    $region17: #{tpu_custom_call.1} parent=1 // pred_fallthru
      _
    // Predicated region
    $region18: #{tpu_custom_call.1} parent=1 // pred_check
      _
    $region19: #{tpu_custom_call.1} parent=1 // pred_check_branch
      %27 = sbr.rel (0) target = $region21
    $region20: #{tpu_custom_call.1} parent=1 // pred_region
      _
    $region21: #{tpu_custom_call.1} parent=1 // pred_fallthru
      _
    // Predicated region
    $region22: #{tpu_custom_call.1} parent=1 // pred_check
      _
    $region23: #{tpu_custom_call.1} parent=1 // pred_check_branch
      %29 = sbr.rel (0) target = $region25
    $region24: #{tpu_custom_call.1} parent=1 // pred_region
      _
    $region25: #{tpu_custom_call.1} parent=1 // pred_fallthru
      _
    // Predicated region
    $region26: #{tpu_custom_call.1} parent=1 // pred_check
      _
    $region27: #{tpu_custom_call.1} parent=1 // pred_check_branch
      %31 = sbr.rel (0) target = $region29
    $region28: #{tpu_custom_call.1} parent=1 // pred_region
      _
    $region29: #{tpu_custom_call.1} parent=1 // pred_fallthru
      _
    // Predicated region
    $region30: #{tpu_custom_call.1} parent=1 // pred_check
      _
    $region31: #{tpu_custom_call.1} parent=1 // pred_check_branch
      %33 = sbr.rel (0) target = $region33
    $region32: #{tpu_custom_call.1} parent=1 // pred_region
      _
    $region33: #{tpu_custom_call.1} parent=1 // pred_fallthru
      _
    // Predicated region
    $region34: #{tpu_custom_call.1} parent=1 // pred_check
      _
    $region35: #{tpu_custom_call.1} parent=1 // pred_check_branch
      %35 = sbr.rel (0) target = $region37
    $region36: #{tpu_custom_call.1} parent=1 // pred_region
      _
    $region37: #{tpu_custom_call.1} parent=1 // pred_fallthru
      _
    // Predicated region
    $region38: #{tpu_custom_call.1} parent=1 // pred_check
      _
    $region39: #{tpu_custom_call.1} parent=1 // pred_check_branch
      %37 = sbr.rel (0) target = $region41
    $region40: #{tpu_custom_call.1} parent=1 // pred_region
      %s39 = ssub.s32 6144, 6144
      %40 = vsyncadd [#allocation4], %s39
      %s41 = sshll.u32 [#allocation3], 4
      %s42 = int_to_ptr.vmem [resolvable:$true] %s41
      %47 = dma.hbm_to_vmem [thread:$0]  %s9, 6144, %s42, [#allocation4], 128, 128, 8
    $region41: #{tpu_custom_call.1} parent=1 // pred_fallthru
      _
    // Predicated region
    $region42: #{tpu_custom_call.1} parent=1 // pred_check
      _
    $region43: #{tpu_custom_call.1} parent=1 // pred_check_branch
      %49 = sbr.rel (0) target = $region45
    $region44: #{tpu_custom_call.1} parent=1 // pred_region
      _
    $region45: #{tpu_custom_call.1} parent=1 // pred_fallthru
      _
    // Predicated region
    $region46: #{tpu_custom_call.1} parent=1 // pred_check
      _
    $region47: #{tpu_custom_call.1} parent=1 // pred_check_branch
      %51 = sbr.rel (0) target = $region49
    $region48: #{tpu_custom_call.1} parent=1 // pred_region
      %52 = dma.done [#allocation4], 6144
    $region49: #{tpu_custom_call.1} parent=1 // pred_fallthru
      _
    %v53 = vld [vmem:[%s0] sm:$0xff]
    %v54 = vld [vmem:[%s0 + $0x10] sm:$0xff]
    %v55 = vld [vmem:[%s0 + $0x30] sm:$0xff]
    %v56 = vld [vmem:[%s0 + $0x40] sm:$0xff]
    %v57 = vld [vmem:[%s1] sm:$0x1]
    %v58 = vlaneseq
    %v59 = vshrl.u32 %v58, 7
    %v60 = vsub.s32 0, %v59
    %v61 = vrot.slane %v57, %v60
    %v62 = vmul.f32 %v53, %v61
    %v63 = vmul.f32 %v54, %v61
    %v64 = vmul.f32 %v55, %v61
    %v65 = vmul.f32 %v56, %v61
    %v66 = vadd.f32 %v62, 0.0
    %v67 = vadd.f32 %v63, 0.0
    %v68 = vadd.f32 %v64, 0.0
    %v69 = vadd.f32 %v65, 0.0
    %v70 = vld [vmem:[%s0 + $0x8] sm:$0xff]
    %v71 = vld [vmem:[%s0 + $0x18] sm:$0xff]
    %v72 = vld [vmem:[%s0 + $0x38] sm:$0xff]
    %v73 = vld [vmem:[%s0 + $0x48] sm:$0xff]
    %v74 = vld [vmem:[%s1 + $0x1] sm:$0x1]
    %v75 = vlaneseq
    %v76 = vshrl.u32 %v75, 7
    %v77 = vsub.s32 0, %v76
    %v78 = vrot.slane %v74, %v77
    %80 = vrot.lane.b32.xlu0 %v78, 8
    %v81 = vpop.permute.xlu0 %80
    %v83 = vmul.f32 %v53, %v81
    %v84 = vmul.f32 %v70, %v81
    %v85 = vmul.f32 %v54, %v81
    %v86 = vmul.f32 %v71, %v81
    %v87 = vmul.f32 %v55, %v81
    %v88 = vmul.f32 %v72, %v81
    %v89 = vmul.f32 %v56, %v81
    %v90 = vmul.f32 %v73, %v81
    %99 = vrot.lane.b32.xlu0 %v83, 120
    %v100 = vpop.permute.xlu0 %99
    %101 = vrot.lane.b32.xlu0 %v84, 120
    %v102 = vpop.permute.xlu0 %101
    %103 = vrot.lane.b32.xlu0 %v85, 120
    %v104 = vpop.permute.xlu0 %103
    %105 = vrot.lane.b32.xlu0 %v86, 120
    %v106 = vpop.permute.xlu0 %105
    %107 = vrot.lane.b32.xlu0 %v87, 120
    %v108 = vpop.permute.xlu0 %107
    %109 = vrot.lane.b32.xlu0 %v88, 120
    %v110 = vpop.permute.xlu0 %109
    %111 = vrot.lane.b32.xlu0 %v89, 120
    %v112 = vpop.permute.xlu0 %111
    %113 = vrot.lane.b32.xlu0 %v90, 120
    %v114 = vpop.permute.xlu0 %113
    %vm115 = vcmask 982016
    %v116 = vsel %vm115, %v100, %v102
    %v117 = vsel %vm115, %v104, %v106
    %v118 = vsel %vm115, %v108, %v110
    %v119 = vsel %vm115, %v112, %v114
    %v124 = vadd.f32 %v66, %v116
    %v125 = vadd.f32 %v67, %v117
    %v126 = vadd.f32 %v68, %v118
    %v127 = vadd.f32 %v69, %v119
    %v128 = vld [vmem:[%s1 + $0x2] sm:$0x1]
    %v129 = vlaneseq
    %v130 = vshrl.u32 %v129, 7
    %v131 = vsub.s32 0, %v130
    %v132 = vrot.slane %v128, %v131
    %134 = vrot.lane.b32.xlu0 %v132, 16
    %v135 = vpop.permute.xlu0 %134
    %v137 = vmul.f32 %v53, %v135
    %v138 = vmul.f32 %v70, %v135
    %v139 = vmul.f32 %v54, %v135
    %v140 = vmul.f32 %v71, %v135
    %v141 = vmul.f32 %v55, %v135
    %v142 = vmul.f32 %v72, %v135
    %v143 = vmul.f32 %v56, %v135
    %v144 = vmul.f32 %v73, %v135
    %153 = vrot.lane.b32.xlu0 %v137, 112
    %v154 = vpop.permute.xlu0 %153
    %155 = vrot.lane.b32.xlu0 %v138, 112
    %v156 = vpop.permute.xlu0 %155
    %157 = vrot.lane.b32.xlu0 %v139, 112
    %v158 = vpop.permute.xlu0 %157
    %159 = vrot.lane.b32.xlu0 %v140, 112
    %v160 = vpop.permute.xlu0 %159
    %161 = vrot.lane.b32.xlu0 %v141, 112
    %v162 = vpop.permute.xlu0 %161
    %163 = vrot.lane.b32.xlu0 %v142, 112
    %v164 = vpop.permute.xlu0 %163
    %165 = vrot.lane.b32.xlu0 %v143, 112
    %v166 = vpop.permute.xlu0 %165
    %167 = vrot.lane.b32.xlu0 %v144, 112
    %v168 = vpop.permute.xlu0 %167
    %vm169 = vcmask 916480
    %v170 = vsel %vm169, %v154, %v156
    %v171 = vsel %vm169, %v158, %v160
    %v172 = vsel %vm169, %v162, %v164
    %v173 = vsel %vm169, %v166, %v168
    %v178 = vadd.f32 %v124, %v170
    %v179 = vadd.f32 %v125, %v171
    %v180 = vadd.f32 %v126, %v172
    %v181 = vadd.f32 %v127, %v173
    %v182 = vld [vmem:[%s0] sm:$0xfe]
    %v183 = vld [vmem:[%s0 + $0x20] sm:$0x1]
    %v184 = vld [vmem:[%s0 + $0x30] sm:$0xfe]
    %v185 = vld [vmem:[%s0 + $0x50] sm:$0x1]
    %v186 = vld [vmem:[%s1 + $0x3] sm:$0x1]
    %v187 = vlaneseq
    %v188 = vshrl.u32 %v187, 7
    %v189 = vsub.s32 0, %v188
    %v190 = vrot.slane %v186, %v189
    %v191 = vmul.f32 %v182, %v190
    %v192 = vmul.f32 %v54, %v190
    %v193 = vmul.f32 %v183, %v190
    %v194 = vmul.f32 %v184, %v190
    %v195 = vmul.f32 %v56, %v190
    %v196 = vmul.f32 %v185, %v190
    %vm203 = vcmask 1046528
    %v204 = vrot.slane %v191, 1
    %v205 = vrot.slane %v192, 1
    %v206 = vsel %vm203, %v204, %v205
    %v207 = vrot.slane %v193, 1
    %v208 = vsel %vm203, %v205, %v207
    %v209 = vrot.slane %v194, 1
    %v210 = vrot.slane %v195, 1
    %v211 = vsel %vm203, %v209, %v210
    %v212 = vrot.slane %v196, 1
    %v213 = vsel %vm203, %v210, %v212
    %v218 = vadd.f32 %v178, %v206
    %v219 = vadd.f32 %v179, %v208
    %v220 = vadd.f32 %v180, %v211
    %v221 = vadd.f32 %v181, %v213
    %v222 = vld [vmem:[%s0 + $0x8] sm:$0xfe]
    %v223 = vld [vmem:[%s0 + $0x28] sm:$0x1]
    %v224 = vld [vmem:[%s0 + $0x38] sm:$0xfe]
    %v225 = vld [vmem:[%s0 + $0x58] sm:$0x1]
    %v226 = vld [vmem:[%s1 + $0x4] sm:$0x1]
    %v227 = vlaneseq
    %v228 = vshrl.u32 %v227, 7
    %v229 = vsub.s32 0, %v228
    %v230 = vrot.slane %v226, %v229
    %232 = vrot.lane.b32.xlu0 %v230, 8
    %v233 = vpop.permute.xlu0 %232
    %v235 = vmul.f32 %v182, %v233
    %v236 = vmul.f32 %v222, %v233
    %v237 = vmul.f32 %v54, %v233
    %v238 = vmul.f32 %v71, %v233
    %v239 = vmul.f32 %v183, %v233
    %v240 = vmul.f32 %v223, %v233
    %v241 = vmul.f32 %v184, %v233
    %v242 = vmul.f32 %v224, %v233
    %v243 = vmul.f32 %v56, %v233
    %v244 = vmul.f32 %v73, %v233
    %v245 = vmul.f32 %v185, %v233
    %v246 = vmul.f32 %v225, %v233
    %v259 = vrot.slane %v235, 1
    %v260 = vrot.slane %v237, 1
    %v261 = vsel %vm203, %v259, %v260
    %v262 = vrot.slane %v236, 1
    %v263 = vrot.slane %v238, 1
    %v264 = vsel %vm203, %v262, %v263
    %v265 = vrot.slane %v239, 1
    %v266 = vsel %vm203, %v260, %v265
    %v267 = vrot.slane %v240, 1
    %v268 = vsel %vm203, %v263, %v267
    %v269 = vrot.slane %v241, 1
    %v270 = vrot.slane %v243, 1
    %v271 = vsel %vm203, %v269, %v270
    %v272 = vrot.slane %v242, 1
    %v273 = vrot.slane %v244, 1
    %v274 = vsel %vm203, %v272, %v273
    %v275 = vrot.slane %v245, 1
    %v276 = vsel %vm203, %v270, %v275
    %v277 = vrot.slane %v246, 1
    %v278 = vsel %vm203, %v273, %v277
    %279 = vrot.lane.b32.xlu0 %v261, 120
    %v280 = vpop.permute.xlu0 %279
    %281 = vrot.lane.b32.xlu0 %v264, 120
    %v282 = vpop.permute.xlu0 %281
    %283 = vrot.lane.b32.xlu0 %v266, 120
    %v284 = vpop.permute.xlu0 %283
    %285 = vrot.lane.b32.xlu0 %v268, 120
    %v286 = vpop.permute.xlu0 %285
    %287 = vrot.lane.b32.xlu0 %v271, 120
    %v288 = vpop.permute.xlu0 %287
    %289 = vrot.lane.b32.xlu0 %v274, 120
    %v290 = vpop.permute.xlu0 %289
    %291 = vrot.lane.b32.xlu0 %v276, 120
    %v292 = vpop.permute.xlu0 %291
    %293 = vrot.lane.b32.xlu0 %v278, 120
    %v294 = vpop.permute.xlu0 %293
    %v295 = vsel %vm115, %v280, %v282
    %v296 = vsel %vm115, %v284, %v286
    %v297 = vsel %vm115, %v288, %v290
    %v298 = vsel %vm115, %v292, %v294
    %v303 = vadd.f32 %v218, %v295
    %v304 = vadd.f32 %v219, %v296
    %v305 = vadd.f32 %v220, %v297
    %v306 = vadd.f32 %v221, %v298
    %v307 = vld [vmem:[%s1 + $0x5] sm:$0x1]
    %v308 = vlaneseq
    %v309 = vshrl.u32 %v308, 7
    %v310 = vsub.s32 0, %v309
    %v311 = vrot.slane %v307, %v310
    %313 = vrot.lane.b32.xlu0 %v311, 16
    %v314 = vpop.permute.xlu0 %313
    %v316 = vmul.f32 %v182, %v314
    %v317 = vmul.f32 %v222, %v314
    %v318 = vmul.f32 %v54, %v314
    %v319 = vmul.f32 %v71, %v314
    %v320 = vmul.f32 %v183, %v314
    %v321 = vmul.f32 %v223, %v314
    %v322 = vmul.f32 %v184, %v314
    %v323 = vmul.f32 %v224, %v314
    %v324 = vmul.f32 %v56, %v314
    %v325 = vmul.f32 %v73, %v314
    %v326 = vmul.f32 %v185, %v314
    %v327 = vmul.f32 %v225, %v314
    %v340 = vrot.slane %v316, 1
    %v341 = vrot.slane %v318, 1
    %v342 = vsel %vm203, %v340, %v341
    %v343 = vrot.slane %v317, 1
    %v344 = vrot.slane %v319, 1
    %v345 = vsel %vm203, %v343, %v344
    %v346 = vrot.slane %v320, 1
    %v347 = vsel %vm203, %v341, %v346
    %v348 = vrot.slane %v321, 1
    %v349 = vsel %vm203, %v344, %v348
    %v350 = vrot.slane %v322, 1
    %v351 = vrot.slane %v324, 1
    %v352 = vsel %vm203, %v350, %v351
    %v353 = vrot.slane %v323, 1
    %v354 = vrot.slane %v325, 1
    %v355 = vsel %vm203, %v353, %v354
    %v356 = vrot.slane %v326, 1
    %v357 = vsel %vm203, %v351, %v356
    %v358 = vrot.slane %v327, 1
    %v359 = vsel %vm203, %v354, %v358
    %360 = vrot.lane.b32.xlu0 %v342, 112
    %v361 = vpop.permute.xlu0 %360
    %362 = vrot.lane.b32.xlu0 %v345, 112
    %v363 = vpop.permute.xlu0 %362
    %364 = vrot.lane.b32.xlu0 %v347, 112
    %v365 = vpop.permute.xlu0 %364
    %366 = vrot.lane.b32.xlu0 %v349, 112
    %v367 = vpop.permute.xlu0 %366
    %368 = vrot.lane.b32.xlu0 %v352, 112
    %v369 = vpop.permute.xlu0 %368
    %370 = vrot.lane.b32.xlu0 %v355, 112
    %v371 = vpop.permute.xlu0 %370
    %372 = vrot.lane.b32.xlu0 %v357, 112
    %v373 = vpop.permute.xlu0 %372
    %374 = vrot.lane.b32.xlu0 %v359, 112
    %v375 = vpop.permute.xlu0 %374
    %v376 = vsel %vm169, %v361, %v363
    %v377 = vsel %vm169, %v365, %v367
    %v378 = vsel %vm169, %v369, %v371
    %v379 = vsel %vm169, %v373, %v375
    %v384 = vadd.f32 %v303, %v376
    %v385 = vadd.f32 %v304, %v377
    %v386 = vadd.f32 %v305, %v378
    %v387 = vadd.f32 %v306, %v379
    %v388 = vld [vmem:[%s0] sm:$0xfc]
    %v389 = vld [vmem:[%s0 + $0x20] sm:$0x3]
    %v390 = vld [vmem:[%s0 + $0x30] sm:$0xfc]
    %v391 = vld [vmem:[%s0 + $0x50] sm:$0x3]
    %v392 = vld [vmem:[%s1 + $0x6] sm:$0x1]
    %v393 = vlaneseq
    %v394 = vshrl.u32 %v393, 7
    %v395 = vsub.s32 0, %v394
    %v396 = vrot.slane %v392, %v395
    %v397 = vmul.f32 %v388, %v396
    %v398 = vmul.f32 %v54, %v396
    %v399 = vmul.f32 %v389, %v396
    %v400 = vmul.f32 %v390, %v396
    %v401 = vmul.f32 %v56, %v396
    %v402 = vmul.f32 %v391, %v396
    %vm409 = vcmask 1045504
    %v410 = vrot.slane %v397, 2
    %v411 = vrot.slane %v398, 2
    %v412 = vsel %vm409, %v410, %v411
    %v413 = vrot.slane %v399, 2
    %v414 = vsel %vm409, %v411, %v413
    %v415 = vrot.slane %v400, 2
    %v416 = vrot.slane %v401, 2
    %v417 = vsel %vm409, %v415, %v416
    %v418 = vrot.slane %v402, 2
    %v419 = vsel %vm409, %v416, %v418
    %v424 = vadd.f32 %v384, %v412
    %v425 = vadd.f32 %v385, %v414
    %v426 = vadd.f32 %v386, %v417
    %v427 = vadd.f32 %v387, %v419
    %v428 = vld [vmem:[%s0 + $0x8] sm:$0xfc]
    %v429 = vld [vmem:[%s0 + $0x28] sm:$0x3]
    %v430 = vld [vmem:[%s0 + $0x38] sm:$0xfc]
    %v431 = vld [vmem:[%s0 + $0x58] sm:$0x3]
    %v432 = vld [vmem:[%s1 + $0x7] sm:$0x1]
    %v433 = vlaneseq
    %v434 = vshrl.u32 %v433, 7
    %v435 = vsub.s32 0, %v434
    %v436 = vrot.slane %v432, %v435
    %438 = vrot.lane.b32.xlu0 %v436, 8
    %v439 = vpop.permute.xlu0 %438
    %v441 = vmul.f32 %v388, %v439
    %v442 = vmul.f32 %v428, %v439
    %v443 = vmul.f32 %v54, %v439
    %v444 = vmul.f32 %v71, %v439
    %v445 = vmul.f32 %v389, %v439
    %v446 = vmul.f32 %v429, %v439
    %v447 = vmul.f32 %v390, %v439
    %v448 = vmul.f32 %v430, %v439
    %v449 = vmul.f32 %v56, %v439
    %v450 = vmul.f32 %v73, %v439
    %v451 = vmul.f32 %v391, %v439
    %v452 = vmul.f32 %v431, %v439
    %v465 = vrot.slane %v441, 2
    %v466 = vrot.slane %v443, 2
    %v467 = vsel %vm409, %v465, %v466
    %v468 = vrot.slane %v442, 2
    %v469 = vrot.slane %v444, 2
    %v470 = vsel %vm409, %v468, %v469
    %v471 = vrot.slane %v445, 2
    %v472 = vsel %vm409, %v466, %v471
    %v473 = vrot.slane %v446, 2
    %v474 = vsel %vm409, %v469, %v473
    %v475 = vrot.slane %v447, 2
    %v476 = vrot.slane %v449, 2
    %v477 = vsel %vm409, %v475, %v476
    %v478 = vrot.slane %v448, 2
    %v479 = vrot.slane %v450, 2
    %v480 = vsel %vm409, %v478, %v479
    %v481 = vrot.slane %v451, 2
    %v482 = vsel %vm409, %v476, %v481
    %v483 = vrot.slane %v452, 2
    %v484 = vsel %vm409, %v479, %v483
    %485 = vrot.lane.b32.xlu0 %v467, 120
    %v486 = vpop.permute.xlu0 %485
    %487 = vrot.lane.b32.xlu0 %v470, 120
    %v488 = vpop.permute.xlu0 %487
    %489 = vrot.lane.b32.xlu0 %v472, 120
    %v490 = vpop.permute.xlu0 %489
    %491 = vrot.lane.b32.xlu0 %v474, 120
    %v492 = vpop.permute.xlu0 %491
    %493 = vrot.lane.b32.xlu0 %v477, 120
    %v494 = vpop.permute.xlu0 %493
    %495 = vrot.lane.b32.xlu0 %v480, 120
    %v496 = vpop.permute.xlu0 %495
    %497 = vrot.lane.b32.xlu0 %v482, 120
    %v498 = vpop.permute.xlu0 %497
    %499 = vrot.lane.b32.xlu0 %v484, 120
    %v500 = vpop.permute.xlu0 %499
    %v501 = vsel %vm115, %v486, %v488
    %v502 = vsel %vm115, %v490, %v492
    %v503 = vsel %vm115, %v494, %v496
    %v504 = vsel %vm115, %v498, %v500
    %v509 = vadd.f32 %v424, %v501
    %v510 = vadd.f32 %v425, %v502
    %v511 = vadd.f32 %v426, %v503
    %v512 = vadd.f32 %v427, %v504
    %v513 = vld [vmem:[%s1 + $0x8] sm:$0x1]
    %v514 = vlaneseq
    %v515 = vshrl.u32 %v514, 7
    %v516 = vsub.s32 0, %v515
    %v517 = vrot.slane %v513, %v516
    %519 = vrot.lane.b32.xlu0 %v517, 16
    %v520 = vpop.permute.xlu0 %519
    %v522 = vmul.f32 %v388, %v520
    %v523 = vmul.f32 %v428, %v520
    %v524 = vmul.f32 %v54, %v520
    %v525 = vmul.f32 %v71, %v520
    %v526 = vmul.f32 %v389, %v520
    %v527 = vmul.f32 %v429, %v520
    %v528 = vmul.f32 %v390, %v520
    %v529 = vmul.f32 %v430, %v520
    %v530 = vmul.f32 %v56, %v520
    %v531 = vmul.f32 %v73, %v520
    %v532 = vmul.f32 %v391, %v520
    %v533 = vmul.f32 %v431, %v520
    %v546 = vrot.slane %v522, 2
    %v547 = vrot.slane %v524, 2
    %v548 = vsel %vm409, %v546, %v547
    %v549 = vrot.slane %v523, 2
    %v550 = vrot.slane %v525, 2
    %v551 = vsel %vm409, %v549, %v550
    %v552 = vrot.slane %v526, 2
    %v553 = vsel %vm409, %v547, %v552
    %v554 = vrot.slane %v527, 2
    %v555 = vsel %vm409, %v550, %v554
    %v556 = vrot.slane %v528, 2
    %v557 = vrot.slane %v530, 2
    %v558 = vsel %vm409, %v556, %v557
    %v559 = vrot.slane %v529, 2
    %v560 = vrot.slane %v531, 2
    %v561 = vsel %vm409, %v559, %v560
    %v562 = vrot.slane %v532, 2
    %v563 = vsel %vm409, %v557, %v562
    %v564 = vrot.slane %v533, 2
    %v565 = vsel %vm409, %v560, %v564
    %566 = vrot.lane.b32.xlu0 %v548, 112
    %v567 = vpop.permute.xlu0 %566
    %568 = vrot.lane.b32.xlu0 %v551, 112
    %v569 = vpop.permute.xlu0 %568
    %570 = vrot.lane.b32.xlu0 %v553, 112
    %v571 = vpop.permute.xlu0 %570
    %572 = vrot.lane.b32.xlu0 %v555, 112
    %v573 = vpop.permute.xlu0 %572
    %574 = vrot.lane.b32.xlu0 %v558, 112
    %v575 = vpop.permute.xlu0 %574
    %576 = vrot.lane.b32.xlu0 %v561, 112
    %v577 = vpop.permute.xlu0 %576
    %578 = vrot.lane.b32.xlu0 %v563, 112
    %v579 = vpop.permute.xlu0 %578
    %580 = vrot.lane.b32.xlu0 %v565, 112
    %v581 = vpop.permute.xlu0 %580
    %v582 = vsel %vm169, %v567, %v569
    %v583 = vsel %vm169, %v571, %v573
    %v584 = vsel %vm169, %v575, %v577
    %v585 = vsel %vm169, %v579, %v581
    %v590 = vadd.f32 %v509, %v582
    %v591 = vadd.f32 %v510, %v583
    %v592 = vadd.f32 %v511, %v584
    %v593 = vadd.f32 %v512, %v585
    %v594 = vld [vmem:[%s2] sm:$0x1]
    %v596 = vlaneseq
    %v597 = vshrl.u32 %v596, 7
    %v598 = vsub.s32 0, %v597
    %v599 = vrot.slane %v594, %v598
    %v601 = vadd.f32 %v590, %v599
    %v602 = vadd.f32 %v591, %v599
    %v603 = vadd.f32 %v592, %v599
    %v604 = vadd.f32 %v593, %v599
    %v605 = vadd.f32 %v601, %v602
    %v606 = vrot.slane %v605, 4
    %v607 = vadd.f32 %v605, %v606
    %v608 = vrot.slane %v607, 2
    %v609 = vadd.f32 %v607, %v608
    %v610 = vrot.slane %v609, 1
    %v611 = vadd.f32 %v609, %v610
    %v612 = vadd.f32 %v603, %v604
    %v613 = vrot.slane %v612, 4
    %v614 = vadd.f32 %v612, %v613
    %v615 = vrot.slane %v614, 2
    %v616 = vadd.f32 %v614, %v615
    %v617 = vrot.slane %v616, 1
    %v618 = vadd.f32 %v616, %v617
    %v619 = vld [vmem:[%s7] sm:$0xff]
    %v620 = vld [vmem:[%s7 + $0x8] sm:$0xff]
    %v621 = vld [vmem:[%s7 + $0x10] sm:$0xff]
    %v622 = vld [vmem:[%s7 + $0x18] sm:$0xff]
    %v623 = vld [vmem:[%s7 + $0x20] sm:$0xff]
    %v624 = vld [vmem:[%s7 + $0x28] sm:$0xff]
    %v625 = vld [vmem:[%s7 + $0x30] sm:$0xff]
    %v626 = vld [vmem:[%s7 + $0x38] sm:$0xff]
    %v627 = vld [vmem:[%s7 + $0x40] sm:$0xff]
    %v628 = vld [vmem:[%s7 + $0x48] sm:$0xff]
    %v629 = vld [vmem:[%s7 + $0x50] sm:$0xff]
    %v630 = vld [vmem:[%s7 + $0x58] sm:$0xff]
    %v631 = vld [vmem:[%s7 + $0x60] sm:$0xff]
    %v632 = vld [vmem:[%s7 + $0x68] sm:$0xff]
    %v633 = vld [vmem:[%s7 + $0x70] sm:$0xff]
    %v634 = vld [vmem:[%s7 + $0x78] sm:$0xff]
    %vm637 = vcmask 1041409
    %v638 = vsel %vm637, %v618, %v611
    %640 = vmatprep.subr.mxu0 0.0
    %641 = vmatpush1.msra.mxu0 %v619
    %642 = vmatprep.subr.mxu0 0.0
    %643 = vmatpush1.msra.mxu0 %v620
    %644 = vmatprep.subr.mxu0 0.0
    %645 = vmatpush1.msra.mxu0 %v621
    %646 = vmatprep.subr.mxu0 0.0
    %647 = vmatpush1.msra.mxu0 %v622
    %648 = vmatprep.subr.mxu0 0.0
    %649 = vmatpush1.msra.mxu0 %v623
    %650 = vmatprep.subr.mxu0 0.0
    %651 = vmatpush1.msra.mxu0 %v624
    %652 = vmatprep.subr.mxu0 0.0
    %653 = vmatpush1.msra.mxu0 %v625
    %654 = vmatprep.subr.mxu0 0.0
    %655 = vmatpush1.msra.mxu0 %v626
    %656 = vmatprep.subr.mxu0 0.0
    %657 = vmatpush1.msra.mxu0 %v627
    %658 = vmatprep.subr.mxu0 0.0
    %659 = vmatpush1.msra.mxu0 %v628
    %660 = vmatprep.subr.mxu0 0.0
    %661 = vmatpush1.msra.mxu0 %v629
    %662 = vmatprep.subr.mxu0 0.0
    %663 = vmatpush1.msra.mxu0 %v630
    %664 = vmatprep.subr.mxu0 0.0
    %665 = vmatpush1.msra.mxu0 %v631
    %666 = vmatprep.subr.mxu0 0.0
    %667 = vmatpush1.msra.mxu0 %v632
    %668 = vmatprep.subr.mxu0 0.0
    %669 = vmatpush1.msra.mxu0 %v633
    %670 = vmatprep.subr.mxu0 0.0
    %671 = vmatpush1.msra.mxu0 %v634
    %672 = vmatprep.subr.mxu0 0.0
    %673 = vmatpush1.msra.mxu0 0.0
    %674 = vmatprep.subr.mxu0 0.0
    %675 = vmatpush1.msra.mxu0 0.0
    %676 = vmatprep.subr.mxu0 0.0
    %677 = vmatpush1.msra.mxu0 0.0
    %678 = vmatprep.subr.mxu0 0.0
    %679 = vmatpush1.msra.mxu0 0.0
    %680 = vmatprep.subr.mxu0 0.0
    %681 = vmatpush1.msra.mxu0 0.0
    %682 = vmatprep.subr.mxu0 0.0
    %683 = vmatpush1.msra.mxu0 0.0
    %684 = vmatprep.subr.mxu0 0.0
    %685 = vmatpush1.msra.mxu0 0.0
    %686 = vmatprep.subr.mxu0 0.0
    %687 = vmatpush1.msra.mxu0 0.0
    %688 = vmatprep.subr.mxu0 0.0
    %689 = vmatpush1.msra.mxu0 0.0
    %690 = vmatprep.subr.mxu0 0.0
    %691 = vmatpush1.msra.mxu0 0.0
    %692 = vmatprep.subr.mxu0 0.0
    %693 = vmatpush1.msra.mxu0 0.0
    %694 = vmatprep.subr.mxu0 0.0
    %695 = vmatpush1.msra.mxu0 0.0
    %696 = vmatprep.subr.mxu0 0.0
    %697 = vmatpush1.msra.mxu0 0.0
    %698 = vmatprep.subr.mxu0 0.0
    %699 = vmatpush1.msra.mxu0 0.0
    %700 = vmatprep.subr.mxu0 0.0
    %701 = vmatpush1.msra.mxu0 0.0
    %702 = vmatprep.subr.mxu0 0.0
    %703 = vmatpush1.msra.mxu0 0.0
    %704 = vmatprep.mubr.f32.mxu0 0.0
    %705 = vmatmul.mubr.f32.gmra.mrb[0].mxu0 %v638
    %v706 = vpop.f32.mrb[0].mxu0
    %v707 = vadd.f32 0.0, %v706
    %v708 = vpop.f32.mrb[0].mxu0
    %709 = vdwg.mxu0
    %v710 = vld [vmem:[%s3] sm:$0xff]
    %v711 = vld [vmem:[%s4] sm:$0x1]
    %v713 = vlaneseq
    %v714 = vshrl.u32 %v713, 7
    %v715 = vsub.s32 0, %v714
    %v716 = vrot.slane %v711, %v715
    %vm718 = vcmask 64512
    %v720 = vsel %vm718, %v707, 0
    %722 = vmatprep.subr.mxu0 0.0
    %723 = vmatpush1.msra.mxu0 %v710
    %724 = vmatprep.subr.mxu0 0.0
    %725 = vmatpush1.msra.mxu0 0.0
    %726 = vmatprep.subr.mxu0 0.0
    %727 = vmatpush1.msra.mxu0 0.0
    %728 = vmatprep.subr.mxu0 0.0
    %729 = vmatpush1.msra.mxu0 0.0
    %730 = vmatprep.subr.mxu0 0.0
    %731 = vmatpush1.msra.mxu0 0.0
    %732 = vmatprep.subr.mxu0 0.0
    %733 = vmatpush1.msra.mxu0 0.0
    %734 = vmatprep.subr.mxu0 0.0
    %735 = vmatpush1.msra.mxu0 0.0
    %736 = vmatprep.subr.mxu0 0.0
    %737 = vmatpush1.msra.mxu0 0.0
    %738 = vmatprep.subr.mxu0 0.0
    %739 = vmatpush1.msra.mxu0 0.0
    %740 = vmatprep.subr.mxu0 0.0
    %741 = vmatpush1.msra.mxu0 0.0
    %742 = vmatprep.subr.mxu0 0.0
    %743 = vmatpush1.msra.mxu0 0.0
    %744 = vmatprep.subr.mxu0 0.0
    %745 = vmatpush1.msra.mxu0 0.0
    %746 = vmatprep.subr.mxu0 0.0
    %747 = vmatpush1.msra.mxu0 0.0
    %748 = vmatprep.subr.mxu0 0.0
    %749 = vmatpush1.msra.mxu0 0.0
    %750 = vmatprep.subr.mxu0 0.0
    %751 = vmatpush1.msra.mxu0 0.0
    %752 = vmatprep.subr.mxu0 0.0
    %753 = vmatpush1.msra.mxu0 0.0
    %754 = vmatprep.subr.mxu0 0.0
    %755 = vmatpush1.msra.mxu0 0.0
    %756 = vmatprep.subr.mxu0 0.0
    %757 = vmatpush1.msra.mxu0 0.0
    %758 = vmatprep.subr.mxu0 0.0
    %759 = vmatpush1.msra.mxu0 0.0
    %760 = vmatprep.subr.mxu0 0.0
    %761 = vmatpush1.msra.mxu0 0.0
    %762 = vmatprep.subr.mxu0 0.0
    %763 = vmatpush1.msra.mxu0 0.0
    %764 = vmatprep.subr.mxu0 0.0
    %765 = vmatpush1.msra.mxu0 0.0
    %766 = vmatprep.subr.mxu0 0.0
    %767 = vmatpush1.msra.mxu0 0.0
    %768 = vmatprep.subr.mxu0 0.0
    %769 = vmatpush1.msra.mxu0 0.0
    %770 = vmatprep.subr.mxu0 0.0
    %771 = vmatpush1.msra.mxu0 0.0
    %772 = vmatprep.subr.mxu0 0.0
    %773 = vmatpush1.msra.mxu0 0.0
    %774 = vmatprep.subr.mxu0 0.0
    %775 = vmatpush1.msra.mxu0 0.0
    %776 = vmatprep.subr.mxu0 0.0
    %777 = vmatpush1.msra.mxu0 0.0
    %778 = vmatprep.subr.mxu0 0.0
    %779 = vmatpush1.msra.mxu0 0.0
    %780 = vmatprep.subr.mxu0 0.0
    %781 = vmatpush1.msra.mxu0 0.0
    %782 = vmatprep.subr.mxu0 0.0
    %783 = vmatpush1.msra.mxu0 0.0
    %784 = vmatprep.subr.mxu0 0.0
    %785 = vmatpush1.msra.mxu0 0.0
    %786 = vmatprep.mubr.f32.mxu0 0.0
    %787 = vmatmul.mubr.f32.gmra.mrb[0].mxu0 %v720
    %v788 = vpop.f32.mrb[0].mxu0
    %v789 = vadd.f32 %v716, %v788
    %v790 = vpop.f32.mrb[0].mxu0
    %791 = vdwg.mxu0
    %v792 = vmax.f32 %v789, 0.0
    %v793 = vld [vmem:[%s5] sm:$0x3]
    %v794 = vld [vmem:[%s6] sm:$0x1]
    %v796 = vlaneseq
    %v797 = vshrl.u32 %v796, 7
    %v798 = vsub.s32 0, %v797
    %v799 = vrot.slane %v794, %v798
    %vm801 = vcmask 15360
    %v803 = vsel %vm801, %v792, 0
    %vm805 = vcmask 1041408
    %v807 = vsel %vm805, %v793, 0
    %809 = vmatprep.subr.mxu0 0.0
    %810 = vmatpush1.msra.mxu0 %v807
    %811 = vmatprep.subr.mxu0 0.0
    %812 = vmatpush1.msra.mxu0 0.0
    %813 = vmatprep.subr.mxu0 0.0
    %814 = vmatpush1.msra.mxu0 0.0
    %815 = vmatprep.subr.mxu0 0.0
    %816 = vmatpush1.msra.mxu0 0.0
    %817 = vmatprep.subr.mxu0 0.0
    %818 = vmatpush1.msra.mxu0 0.0
    %819 = vmatprep.subr.mxu0 0.0
    %820 = vmatpush1.msra.mxu0 0.0
    %821 = vmatprep.subr.mxu0 0.0
    %822 = vmatpush1.msra.mxu0 0.0
    %823 = vmatprep.subr.mxu0 0.0
    %824 = vmatpush1.msra.mxu0 0.0
    %825 = vmatprep.subr.mxu0 0.0
    %826 = vmatpush1.msra.mxu0 0.0
    %827 = vmatprep.subr.mxu0 0.0
    %828 = vmatpush1.msra.mxu0 0.0
    %829 = vmatprep.subr.mxu0 0.0
    %830 = vmatpush1.msra.mxu0 0.0
    %831 = vmatprep.subr.mxu0 0.0
    %832 = vmatpush1.msra.mxu0 0.0
    %833 = vmatprep.subr.mxu0 0.0
    %834 = vmatpush1.msra.mxu0 0.0
    %835 = vmatprep.subr.mxu0 0.0
    %836 = vmatpush1.msra.mxu0 0.0
    %837 = vmatprep.subr.mxu0 0.0
    %838 = vmatpush1.msra.mxu0 0.0
    %839 = vmatprep.subr.mxu0 0.0
    %840 = vmatpush1.msra.mxu0 0.0
    %841 = vmatprep.subr.mxu0 0.0
    %842 = vmatpush1.msra.mxu0 0.0
    %843 = vmatprep.subr.mxu0 0.0
    %844 = vmatpush1.msra.mxu0 0.0
    %845 = vmatprep.subr.mxu0 0.0
    %846 = vmatpush1.msra.mxu0 0.0
    %847 = vmatprep.subr.mxu0 0.0
    %848 = vmatpush1.msra.mxu0 0.0
    %849 = vmatprep.subr.mxu0 0.0
    %850 = vmatpush1.msra.mxu0 0.0
    %851 = vmatprep.subr.mxu0 0.0
    %852 = vmatpush1.msra.mxu0 0.0
    %853 = vmatprep.subr.mxu0 0.0
    %854 = vmatpush1.msra.mxu0 0.0
    %855 = vmatprep.subr.mxu0 0.0
    %856 = vmatpush1.msra.mxu0 0.0
    %857 = vmatprep.subr.mxu0 0.0
    %858 = vmatpush1.msra.mxu0 0.0
    %859 = vmatprep.subr.mxu0 0.0
    %860 = vmatpush1.msra.mxu0 0.0
    %861 = vmatprep.subr.mxu0 0.0
    %862 = vmatpush1.msra.mxu0 0.0
    %863 = vmatprep.subr.mxu0 0.0
    %864 = vmatpush1.msra.mxu0 0.0
    %865 = vmatprep.subr.mxu0 0.0
    %866 = vmatpush1.msra.mxu0 0.0
    %867 = vmatprep.subr.mxu0 0.0
    %868 = vmatpush1.msra.mxu0 0.0
    %869 = vmatprep.subr.mxu0 0.0
    %870 = vmatpush1.msra.mxu0 0.0
    %871 = vmatprep.subr.mxu0 0.0
    %872 = vmatpush1.msra.mxu0 0.0
    %873 = vmatprep.mubr.f32.mxu0 0.0
    %874 = vmatmul.mubr.f32.gmra.mrb[0].mxu0 %v803
    %v875 = vpop.f32.mrb[0].mxu0
    %v876 = vadd.f32 %v799, %v875
    %v877 = vpop.f32.mrb[0].mxu0
    %878 = vdwg.mxu0
    %v879 = vxor.u32 %v876, 2147483648
    %v880 = vmul.f32 %v879, 1.442695
    %v881 = vpow.pop %v880
    %v882 = vadd.f32 %v881, 1.0
    %v883 = vrcp.pop %v882
    %v884 = vmul.f32 1.0, %v883
    %v885 = vld [vmem:[%s8] sm:$0xff]
    %v887 = vsel %vm718, %v884, 0
    %889 = vmatprep.subr.mxu0 0.0
    %890 = vmatpush1.msra.mxu0 %v885
    %891 = vmatprep.subr.mxu0 0.0
    %892 = vmatpush1.msra.mxu0 0.0
    %893 = vmatprep.subr.mxu0 0.0
    %894 = vmatpush1.msra.mxu0 0.0
    %895 = vmatprep.subr.mxu0 0.0
    %896 = vmatpush1.msra.mxu0 0.0
    %897 = vmatprep.subr.mxu0 0.0
    %898 = vmatpush1.msra.mxu0 0.0
    %899 = vmatprep.subr.mxu0 0.0
    %900 = vmatpush1.msra.mxu0 0.0
    %901 = vmatprep.subr.mxu0 0.0
    %902 = vmatpush1.msra.mxu0 0.0
    %903 = vmatprep.subr.mxu0 0.0
    %904 = vmatpush1.msra.mxu0 0.0
    %905 = vmatprep.subr.mxu0 0.0
    %906 = vmatpush1.msra.mxu0 0.0
    %907 = vmatprep.subr.mxu0 0.0
    %908 = vmatpush1.msra.mxu0 0.0
    %909 = vmatprep.subr.mxu0 0.0
    %910 = vmatpush1.msra.mxu0 0.0
    %911 = vmatprep.subr.mxu0 0.0
    %912 = vmatpush1.msra.mxu0 0.0
    %913 = vmatprep.subr.mxu0 0.0
    %914 = vmatpush1.msra.mxu0 0.0
    %915 = vmatprep.subr.mxu0 0.0
    %916 = vmatpush1.msra.mxu0 0.0
    %917 = vmatprep.subr.mxu0 0.0
    %918 = vmatpush1.msra.mxu0 0.0
    %919 = vmatprep.subr.mxu0 0.0
    %920 = vmatpush1.msra.mxu0 0.0
    %921 = vmatprep.subr.mxu0 0.0
    %922 = vmatpush1.msra.mxu0 0.0
    %923 = vmatprep.subr.mxu0 0.0
    %924 = vmatpush1.msra.mxu0 0.0
    %925 = vmatprep.subr.mxu0 0.0
    %926 = vmatpush1.msra.mxu0 0.0
    %927 = vmatprep.subr.mxu0 0.0
    %928 = vmatpush1.msra.mxu0 0.0
    %929 = vmatprep.subr.mxu0 0.0
    %930 = vmatpush1.msra.mxu0 0.0
    %931 = vmatprep.subr.mxu0 0.0
    %932 = vmatpush1.msra.mxu0 0.0
    %933 = vmatprep.subr.mxu0 0.0
    %934 = vmatpush1.msra.mxu0 0.0
    %935 = vmatprep.subr.mxu0 0.0
    %936 = vmatpush1.msra.mxu0 0.0
    %937 = vmatprep.subr.mxu0 0.0
    %938 = vmatpush1.msra.mxu0 0.0
    %939 = vmatprep.subr.mxu0 0.0
    %940 = vmatpush1.msra.mxu0 0.0
    %941 = vmatprep.subr.mxu0 0.0
    %942 = vmatpush1.msra.mxu0 0.0
    %943 = vmatprep.subr.mxu0 0.0
    %944 = vmatpush1.msra.mxu0 0.0
    %945 = vmatprep.subr.mxu0 0.0
    %946 = vmatpush1.msra.mxu0 0.0
    %947 = vmatprep.subr.mxu0 0.0
    %948 = vmatpush1.msra.mxu0 0.0
    %949 = vmatprep.subr.mxu0 0.0
    %950 = vmatpush1.msra.mxu0 0.0
    %951 = vmatprep.subr.mxu0 0.0
    %952 = vmatpush1.msra.mxu0 0.0
    %953 = vmatprep.mubr.f32.mxu0 0.0
    %954 = vmatmul.mubr.f32.gmra.mrb[0].mxu0 %v887
    %v955 = vpop.f32.mrb[0].mxu0
    %v956 = vadd.f32 0.0, %v955
    %v957 = vpop.f32.mrb[0].mxu0
    %958 = vdwg.mxu0
    %v961 = vunpack.c.l.s4 1966171168
    %v962 = vunpack.c.0.s8 %v961
    %v963 = vlaneseq
    %v964 = vshrl.u32 %v963, 7
    %v965 = vsub.s32 %v962, %v964
    %v966 = vrot.slane %v956, %v965
    %v967 = vcombine.high %v966, %v966
    %v969 = vunpack.c.l.s4 1966171168
    %v970 = vunpack.c.0.s8 %v969
    %v971 = vlaneseq
    %v972 = vshrl.u32 %v971, 7
    %v973 = vsub.s32 %v970, %v972
    %v974 = vrot.slane %v966, %v973
    %v976 = vunpack.c.l.s4 1966171168
    %v977 = vunpack.c.0.s8 %v976
    %v978 = vlaneseq
    %v979 = vshrl.u32 %v978, 7
    %v980 = vsub.s32 %v977, %v979
    %v981 = vrot.slane %v967, %v980
    %v982 = vlaneseq
    %v983 = vshrl.u32 %v982, 7
    %v984 = vsub.s32 0, %v983
    %v985 = vrot.slane %v974, %v984
    %v986 = vlaneseq
    %v987 = vshrl.u32 %v986, 7
    %v988 = vsub.s32 0, %v987
    %v989 = vrot.slane %v981, %v988
    %v992 = vmul.f32 %v601, %v985
    %v993 = vmul.f32 %v602, %v985
    %v994 = vmul.f32 %v603, %v989
    %v995 = vmul.f32 %v604, %v989
    %996 = vst [vmem:[#allocation2] sm:$0x1] 0.0
    %997 = vst [vmem:[#allocation2 + $0x18] sm:$0x1] 0.0
    %998 = vst [vmem:[#allocation2 + $0x11] sm:$0x1] 0.0
    %999 = vst [vmem:[#allocation2 + $0x29] sm:$0x1] 0.0
    %1000 = vst [vmem:[#allocation2 + $0x1] sm:$0xff] %v992
    %1001 = vst [vmem:[#allocation2 + $0x9] sm:$0xff] %v993
    %1002 = vst [vmem:[#allocation2 + $0x19] sm:$0xff] %v994
    %1003 = vst [vmem:[#allocation2 + $0x21] sm:$0xff] %v995
    %v1004 = vld [vmem:[#allocation2] sm:$0xff]
    %v1005 = vld [vmem:[#allocation2 + $0x8] sm:$0xff]
    %v1006 = vld [vmem:[#allocation2 + $0x18] sm:$0xff]
    %v1007 = vld [vmem:[#allocation2 + $0x20] sm:$0xff]
    %v1008 = vld [vmem:[#allocation3] sm:$0xff]
    %v1009 = vld [vmem:[#allocation3 + $0x8] sm:$0xff]
    %v1010 = vld [vmem:[#allocation3 + $0x10] sm:$0xff]
    %v1011 = vld [vmem:[#allocation3 + $0x18] sm:$0xff]
    %v1012 = vld [vmem:[#allocation3 + $0x20] sm:$0xff]
    %v1013 = vld [vmem:[#allocation3 + $0x28] sm:$0xff]
    %v1014 = vld [vmem:[#allocation3 + $0x30] sm:$0xff]
    %v1015 = vld [vmem:[#allocation3 + $0x38] sm:$0xff]
    %v1016 = vld [vmem:[#allocation3 + $0x40] sm:$0xff]
    %v1017 = vld [vmem:[#allocation3 + $0x48] sm:$0xff]
    %v1018 = vld [vmem:[#allocation3 + $0x50] sm:$0xff]
    %v1019 = vld [vmem:[#allocation3 + $0x58] sm:$0xff]
    %v1020 = vld [vmem:[#allocation3 + $0x60] sm:$0xff]
    %v1021 = vld [vmem:[#allocation3 + $0x68] sm:$0xff]
    %v1022 = vld [vmem:[#allocation3 + $0x70] sm:$0xff]
    %v1023 = vld [vmem:[#allocation3 + $0x78] sm:$0xff]
    %1024 = vmatprep.subr.mxu0 0.0
    %1025 = vmatpush1.msra.mxu0 %v1008
    %1026 = vmatprep.subr.mxu0 0.0
    %1027 = vmatpush1.msra.mxu0 %v1009
    %1028 = vmatprep.subr.mxu0 0.0
    %1029 = vmatpush1.msra.mxu0 %v1010
    %1030 = vmatprep.subr.mxu0 0.0
    %1031 = vmatpush1.msra.mxu0 %v1011
    %1032 = vmatprep.subr.mxu0 0.0
    %1033 = vmatpush1.msra.mxu0 %v1012
    %1034 = vmatprep.subr.mxu0 0.0
    %1035 = vmatpush1.msra.mxu0 %v1013
    %1036 = vmatprep.subr.mxu0 0.0
    %1037 = vmatpush1.msra.mxu0 %v1014
    %1038 = vmatprep.subr.mxu0 0.0
    %1039 = vmatpush1.msra.mxu0 %v1015
    %1040 = vmatprep.subr.mxu0 0.0
    %1041 = vmatpush1.msra.mxu0 %v1016
    %1042 = vmatprep.subr.mxu0 0.0
    %1043 = vmatpush1.msra.mxu0 %v1017
    %1044 = vmatprep.subr.mxu0 0.0
    %1045 = vmatpush1.msra.mxu0 %v1018
    %1046 = vmatprep.subr.mxu0 0.0
    %1047 = vmatpush1.msra.mxu0 %v1019
    %1048 = vmatprep.subr.mxu0 0.0
    %1049 = vmatpush1.msra.mxu0 %v1020
    %1050 = vmatprep.subr.mxu0 0.0
    %1051 = vmatpush1.msra.mxu0 %v1021
    %1052 = vmatprep.subr.mxu0 0.0
    %1053 = vmatpush1.msra.mxu0 %v1022
    %1054 = vmatprep.subr.mxu0 0.0
    %1055 = vmatpush1.msra.mxu0 %v1023
    %1056 = vmatprep.subr.mxu0 0.0
    %1057 = vmatpush1.msra.mxu0 0.0
    %1058 = vmatprep.subr.mxu0 0.0
    %1059 = vmatpush1.msra.mxu0 0.0
    %1060 = vmatprep.subr.mxu0 0.0
    %1061 = vmatpush1.msra.mxu0 0.0
    %1062 = vmatprep.subr.mxu0 0.0
    %1063 = vmatpush1.msra.mxu0 0.0
    %1064 = vmatprep.subr.mxu0 0.0
    %1065 = vmatpush1.msra.mxu0 0.0
    %1066 = vmatprep.subr.mxu0 0.0
    %1067 = vmatpush1.msra.mxu0 0.0
    %1068 = vmatprep.subr.mxu0 0.0
    %1069 = vmatpush1.msra.mxu0 0.0
    %1070 = vmatprep.subr.mxu0 0.0
    %1071 = vmatpush1.msra.mxu0 0.0
    %1072 = vmatprep.subr.mxu0 0.0
    %1073 = vmatpush1.msra.mxu0 0.0
    %1074 = vmatprep.subr.mxu0 0.0
    %1075 = vmatpush1.msra.mxu0 0.0
    %1076 = vmatprep.subr.mxu0 0.0
    %1077 = vmatpush1.msra.mxu0 0.0
    %1078 = vmatprep.subr.mxu0 0.0
    %1079 = vmatpush1.msra.mxu0 0.0
    %1080 = vmatprep.subr.mxu0 0.0
    %1081 = vmatpush1.msra.mxu0 0.0
    %1082 = vmatprep.subr.mxu0 0.0
    %1083 = vmatpush1.msra.mxu0 0.0
    %1084 = vmatprep.subr.mxu0 0.0
    %1085 = vmatpush1.msra.mxu0 0.0
    %1086 = vmatprep.subr.mxu0 0.0
    %1087 = vmatpush1.msra.mxu0 0.0
    %1088 = vmatprep.mubr.f32.mxu0 0.0
    %1089 = vmatmul.mubr.f32.gmra.mrb[0].mxu0 %v1004
    %v1090 = vpop.f32.mrb[0].mxu0
    %v1091 = vadd.f32 0.0, %v1090
    %v1092 = vpop.f32.mrb[0].mxu0
    %1093 = vmatprep.mubr.f32.mxu0 0.0
    %1094 = vmatmul.mubr.f32.gmra.mrb[0].mxu0 %v1005
    %v1095 = vpop.f32.mrb[0].mxu0
    %v1096 = vadd.f32 0.0, %v1095
    %v1097 = vpop.f32.mrb[0].mxu0
    %1098 = vmatprep.mubr.f32.mxu0 0.0
    %1099 = vmatmul.mubr.f32.gmra.mrb[0].mxu0 %v1006
    %v1100 = vpop.f32.mrb[0].mxu0
    %v1101 = vadd.f32 0.0, %v1100
    %v1102 = vpop.f32.mrb[0].mxu0
    %1103 = vmatprep.mubr.f32.mxu0 0.0
    %1104 = vmatmul.mubr.f32.gmra.mrb[0].mxu0 %v1007
    %v1105 = vpop.f32.mrb[0].mxu0
    %v1106 = vadd.f32 0.0, %v1105
    %v1107 = vpop.f32.mrb[0].mxu0
    %1108 = vdwg.mxu0
    %v1109 = vadd.f32 %v1091, 0.0
    %v1110 = vadd.f32 %v1096, 0.0
    %v1111 = vadd.f32 %v1101, 0.0
    %v1112 = vadd.f32 %v1106, 0.0
    %v1113 = vld [vmem:[#allocation2 + $0x1] sm:$0xff]
    %v1114 = vld [vmem:[#allocation2 + $0x9] sm:$0xff]
    %v1115 = vld [vmem:[#allocation2 + $0x19] sm:$0xff]
    %v1116 = vld [vmem:[#allocation2 + $0x21] sm:$0xff]
    %s1117 = scalar_lea.vmem [#allocation3], 128
    %v1118 = vld [vmem:[%s1117] sm:$0xff]
    %v1119 = vld [vmem:[%s1117 + $0x8] sm:$0xff]
    %v1120 = vld [vmem:[%s1117 + $0x10] sm:$0xff]
    %v1121 = vld [vmem:[%s1117 + $0x18] sm:$0xff]
    %v1122 = vld [vmem:[%s1117 + $0x20] sm:$0xff]
    %v1123 = vld [vmem:[%s1117 + $0x28] sm:$0xff]
    %v1124 = vld [vmem:[%s1117 + $0x30] sm:$0xff]
    %v1125 = vld [vmem:[%s1117 + $0x38] sm:$0xff]
    %v1126 = vld [vmem:[%s1117 + $0x40] sm:$0xff]
    %v1127 = vld [vmem:[%s1117 + $0x48] sm:$0xff]
    %v1128 = vld [vmem:[%s1117 + $0x50] sm:$0xff]
    %v1129 = vld [vmem:[%s1117 + $0x58] sm:$0xff]
    %v1130 = vld [vmem:[%s1117 + $0x60] sm:$0xff]
    %v1131 = vld [vmem:[%s1117 + $0x68] sm:$0xff]
    %v1132 = vld [vmem:[%s1117 + $0x70] sm:$0xff]
    %v1133 = vld [vmem:[%s1117 + $0x78] sm:$0xff]
    %1134 = vmatprep.subr.mxu0 0.0
    %1135 = vmatpush1.msra.mxu0 %v1118
    %1136 = vmatprep.subr.mxu0 0.0
    %1137 = vmatpush1.msra.mxu0 %v1119
    %1138 = vmatprep.subr.mxu0 0.0
    %1139 = vmatpush1.msra.mxu0 %v1120
    %1140 = vmatprep.subr.mxu0 0.0
    %1141 = vmatpush1.msra.mxu0 %v1121
    %1142 = vmatprep.subr.mxu0 0.0
    %1143 = vmatpush1.msra.mxu0 %v1122
    %1144 = vmatprep.subr.mxu0 0.0
    %1145 = vmatpush1.msra.mxu0 %v1123
    %1146 = vmatprep.subr.mxu0 0.0
    %1147 = vmatpush1.msra.mxu0 %v1124
    %1148 = vmatprep.subr.mxu0 0.0
    %1149 = vmatpush1.msra.mxu0 %v1125
    %1150 = vmatprep.subr.mxu0 0.0
    %1151 = vmatpush1.msra.mxu0 %v1126
    %1152 = vmatprep.subr.mxu0 0.0
    %1153 = vmatpush1.msra.mxu0 %v1127
    %1154 = vmatprep.subr.mxu0 0.0
    %1155 = vmatpush1.msra.mxu0 %v1128
    %1156 = vmatprep.subr.mxu0 0.0
    %1157 = vmatpush1.msra.mxu0 %v1129
    %1158 = vmatprep.subr.mxu0 0.0
    %1159 = vmatpush1.msra.mxu0 %v1130
    %1160 = vmatprep.subr.mxu0 0.0
    %1161 = vmatpush1.msra.mxu0 %v1131
    %1162 = vmatprep.subr.mxu0 0.0
    %1163 = vmatpush1.msra.mxu0 %v1132
    %1164 = vmatprep.subr.mxu0 0.0
    %1165 = vmatpush1.msra.mxu0 %v1133
    %1166 = vmatprep.subr.mxu0 0.0
    %1167 = vmatpush1.msra.mxu0 0.0
    %1168 = vmatprep.subr.mxu0 0.0
    %1169 = vmatpush1.msra.mxu0 0.0
    %1170 = vmatprep.subr.mxu0 0.0
    %1171 = vmatpush1.msra.mxu0 0.0
    %1172 = vmatprep.subr.mxu0 0.0
    %1173 = vmatpush1.msra.mxu0 0.0
    %1174 = vmatprep.subr.mxu0 0.0
    %1175 = vmatpush1.msra.mxu0 0.0
    %1176 = vmatprep.subr.mxu0 0.0
    %1177 = vmatpush1.msra.mxu0 0.0
    %1178 = vmatprep.subr.mxu0 0.0
    %1179 = vmatpush1.msra.mxu0 0.0
    %1180 = vmatprep.subr.mxu0 0.0
    %1181 = vmatpush1.msra.mxu0 0.0
    %1182 = vmatprep.subr.mxu0 0.0
    %1183 = vmatpush1.msra.mxu0 0.0
    %1184 = vmatprep.subr.mxu0 0.0
    %1185 = vmatpush1.msra.mxu0 0.0
    %1186 = vmatprep.subr.mxu0 0.0
    %1187 = vmatpush1.msra.mxu0 0.0
    %1188 = vmatprep.subr.mxu0 0.0
    %1189 = vmatpush1.msra.mxu0 0.0
    %1190 = vmatprep.subr.mxu0 0.0
    %1191 = vmatpush1.msra.mxu0 0.0
    %1192 = vmatprep.subr.mxu0 0.0
    %1193 = vmatpush1.msra.mxu0 0.0
    %1194 = vmatprep.subr.mxu0 0.0
    %1195 = vmatpush1.msra.mxu0 0.0
    %1196 = vmatprep.subr.mxu0 0.0
    %1197 = vmatpush1.msra.mxu0 0.0
    %1198 = vmatprep.mubr.f32.mxu0 0.0
    %1199 = vmatmul.mubr.f32.gmra.mrb[0].mxu0 %v1113
    %v1200 = vpop.f32.mrb[0].mxu0
    %v1201 = vadd.f32 0.0, %v1200
    %v1202 = vpop.f32.mrb[0].mxu0
    %1203 = vmatprep.mubr.f32.mxu0 0.0
    %1204 = vmatmul.mubr.f32.gmra.mrb[0].mxu0 %v1114
    %v1205 = vpop.f32.mrb[0].mxu0
    %v1206 = vadd.f32 0.0, %v1205
    %v1207 = vpop.f32.mrb[0].mxu0
    %1208 = vmatprep.mubr.f32.mxu0 0.0
    %1209 = vmatmul.mubr.f32.gmra.mrb[0].mxu0 %v1115
    %v1210 = vpop.f32.mrb[0].mxu0
    %v1211 = vadd.f32 0.0, %v1210
    %v1212 = vpop.f32.mrb[0].mxu0
    %1213 = vmatprep.mubr.f32.mxu0 0.0
    %1214 = vmatmul.mubr.f32.gmra.mrb[0].mxu0 %v1116
    %v1215 = vpop.f32.mrb[0].mxu0
    %v1216 = vadd.f32 0.0, %v1215
    %v1217 = vpop.f32.mrb[0].mxu0
    %1218 = vdwg.mxu0
    %v1219 = vadd.f32 %v1109, %v1201
    %v1220 = vadd.f32 %v1110, %v1206
    %v1221 = vadd.f32 %v1111, %v1211
    %v1222 = vadd.f32 %v1112, %v1216
    %v1223 = vld [vmem:[#allocation2 + $0x2] sm:$0xff]
    %v1224 = vld [vmem:[#allocation2 + $0xa] sm:$0xff]
    %v1225 = vld [vmem:[#allocation2 + $0x1a] sm:$0xff]
    %v1226 = vld [vmem:[#allocation2 + $0x22] sm:$0xff]
    %s1227 = scalar_lea.vmem [#allocation3], 256
    %v1228 = vld [vmem:[%s1227] sm:$0xff]
    %v1229 = vld [vmem:[%s1227 + $0x8] sm:$0xff]
    %v1230 = vld [vmem:[%s1227 + $0x10] sm:$0xff]
    %v1231 = vld [vmem:[%s1227 + $0x18] sm:$0xff]
    %v1232 = vld [vmem:[%s1227 + $0x20] sm:$0xff]
    %v1233 = vld [vmem:[%s1227 + $0x28] sm:$0xff]
    %v1234 = vld [vmem:[%s1227 + $0x30] sm:$0xff]
    %v1235 = vld [vmem:[%s1227 + $0x38] sm:$0xff]
    %v1236 = vld [vmem:[%s1227 + $0x40] sm:$0xff]
    %v1237 = vld [vmem:[%s1227 + $0x48] sm:$0xff]
    %v1238 = vld [vmem:[%s1227 + $0x50] sm:$0xff]
    %v1239 = vld [vmem:[%s1227 + $0x58] sm:$0xff]
    %v1240 = vld [vmem:[%s1227 + $0x60] sm:$0xff]
    %v1241 = vld [vmem:[%s1227 + $0x68] sm:$0xff]
    %v1242 = vld [vmem:[%s1227 + $0x70] sm:$0xff]
    %v1243 = vld [vmem:[%s1227 + $0x78] sm:$0xff]
    %1244 = vmatprep.subr.mxu0 0.0
    %1245 = vmatpush1.msra.mxu0 %v1228
    %1246 = vmatprep.subr.mxu0 0.0
    %1247 = vmatpush1.msra.mxu0 %v1229
    %1248 = vmatprep.subr.mxu0 0.0
    %1249 = vmatpush1.msra.mxu0 %v1230
    %1250 = vmatprep.subr.mxu0 0.0
    %1251 = vmatpush1.msra.mxu0 %v1231
    %1252 = vmatprep.subr.mxu0 0.0
    %1253 = vmatpush1.msra.mxu0 %v1232
    %1254 = vmatprep.subr.mxu0 0.0
    %1255 = vmatpush1.msra.mxu0 %v1233
    %1256 = vmatprep.subr.mxu0 0.0
    %1257 = vmatpush1.msra.mxu0 %v1234
    %1258 = vmatprep.subr.mxu0 0.0
    %1259 = vmatpush1.msra.mxu0 %v1235
    %1260 = vmatprep.subr.mxu0 0.0
    %1261 = vmatpush1.msra.mxu0 %v1236
    %1262 = vmatprep.subr.mxu0 0.0
    %1263 = vmatpush1.msra.mxu0 %v1237
    %1264 = vmatprep.subr.mxu0 0.0
    %1265 = vmatpush1.msra.mxu0 %v1238
    %1266 = vmatprep.subr.mxu0 0.0
    %1267 = vmatpush1.msra.mxu0 %v1239
    %1268 = vmatprep.subr.mxu0 0.0
    %1269 = vmatpush1.msra.mxu0 %v1240
    %1270 = vmatprep.subr.mxu0 0.0
    %1271 = vmatpush1.msra.mxu0 %v1241
    %1272 = vmatprep.subr.mxu0 0.0
    %1273 = vmatpush1.msra.mxu0 %v1242
    %1274 = vmatprep.subr.mxu0 0.0
    %1275 = vmatpush1.msra.mxu0 %v1243
    %1276 = vmatprep.subr.mxu0 0.0
    %1277 = vmatpush1.msra.mxu0 0.0
    %1278 = vmatprep.subr.mxu0 0.0
    %1279 = vmatpush1.msra.mxu0 0.0
    %1280 = vmatprep.subr.mxu0 0.0
    %1281 = vmatpush1.msra.mxu0 0.0
    %1282 = vmatprep.subr.mxu0 0.0
    %1283 = vmatpush1.msra.mxu0 0.0
    %1284 = vmatprep.subr.mxu0 0.0
    %1285 = vmatpush1.msra.mxu0 0.0
    %1286 = vmatprep.subr.mxu0 0.0
    %1287 = vmatpush1.msra.mxu0 0.0
    %1288 = vmatprep.subr.mxu0 0.0
    %1289 = vmatpush1.msra.mxu0 0.0
    %1290 = vmatprep.subr.mxu0 0.0
    %1291 = vmatpush1.msra.mxu0 0.0
    %1292 = vmatprep.subr.mxu0 0.0
    %1293 = vmatpush1.msra.mxu0 0.0
    %1294 = vmatprep.subr.mxu0 0.0
    %1295 = vmatpush1.msra.mxu0 0.0
    %1296 = vmatprep.subr.mxu0 0.0
    %1297 = vmatpush1.msra.mxu0 0.0
    %1298 = vmatprep.subr.mxu0 0.0
    %1299 = vmatpush1.msra.mxu0 0.0
    %1300 = vmatprep.subr.mxu0 0.0
    %1301 = vmatpush1.msra.mxu0 0.0
    %1302 = vmatprep.subr.mxu0 0.0
    %1303 = vmatpush1.msra.mxu0 0.0
    %1304 = vmatprep.subr.mxu0 0.0
    %1305 = vmatpush1.msra.mxu0 0.0
    %1306 = vmatprep.subr.mxu0 0.0
    %1307 = vmatpush1.msra.mxu0 0.0
    %1308 = vmatprep.mubr.f32.mxu0 0.0
    %1309 = vmatmul.mubr.f32.gmra.mrb[0].mxu0 %v1223
    %v1310 = vpop.f32.mrb[0].mxu0
    %v1311 = vadd.f32 0.0, %v1310
    %v1312 = vpop.f32.mrb[0].mxu0
    %1313 = vmatprep.mubr.f32.mxu0 0.0
    %1314 = vmatmul.mubr.f32.gmra.mrb[0].mxu0 %v1224
    %v1315 = vpop.f32.mrb[0].mxu0
    %v1316 = vadd.f32 0.0, %v1315
    %v1317 = vpop.f32.mrb[0].mxu0
    %1318 = vmatprep.mubr.f32.mxu0 0.0
    %1319 = vmatmul.mubr.f32.gmra.mrb[0].mxu0 %v1225
    %v1320 = vpop.f32.mrb[0].mxu0
    %v1321 = vadd.f32 0.0, %v1320
    %v1322 = vpop.f32.mrb[0].mxu0
    %1323 = vmatprep.mubr.f32.mxu0 0.0
    %1324 = vmatmul.mubr.f32.gmra.mrb[0].mxu0 %v1226
    %v1325 = vpop.f32.mrb[0].mxu0
    %v1326 = vadd.f32 0.0, %v1325
    %v1327 = vpop.f32.mrb[0].mxu0
    %1328 = vdwg.mxu0
    %v1329 = vadd.f32 %v1219, %v1311
    %v1330 = vadd.f32 %v1220, %v1316
    %v1331 = vadd.f32 %v1221, %v1321
    %v1332 = vadd.f32 %v1222, %v1326
    %v1333 = vld [vmem:[%s10] sm:$0x1]
    %v1335 = vlaneseq
    %v1336 = vshrl.u32 %v1335, 7
    %v1337 = vsub.s32 0, %v1336
    %v1338 = vrot.slane %v1333, %v1337
    %v1340 = vadd.f32 %v1329, %v1338
    %v1341 = vadd.f32 %v1330, %v1338
    %v1342 = vadd.f32 %v1331, %v1338
    %v1343 = vadd.f32 %v1332, %v1338
    %v1344 = vld [vmem:[%s0] sm:$0xfe]
    %v1345 = vld [vmem:[%s0 + $0x8] sm:$0xfe]
    %v1346 = vld [vmem:[%s0 + $0x10] sm:$0xff]
    %v1347 = vld [vmem:[%s0 + $0x18] sm:$0xff]
    %v1348 = vld [vmem:[%s0 + $0x20] sm:$0x1]
    %v1349 = vld [vmem:[%s0 + $0x28] sm:$0x1]
    %v1350 = vld [vmem:[%s0 + $0x30] sm:$0xfe]
    %v1351 = vld [vmem:[%s0 + $0x38] sm:$0xfe]
    %v1352 = vld [vmem:[%s0 + $0x40] sm:$0xff]
    %v1353 = vld [vmem:[%s0 + $0x48] sm:$0xff]
    %v1354 = vld [vmem:[%s0 + $0x50] sm:$0x1]
    %v1355 = vld [vmem:[%s0 + $0x58] sm:$0x1]
    %v1356 = vmax.f32 %v1340, 0.0
    %v1357 = vmax.f32 %v1341, 0.0
    %v1358 = vmax.f32 %v1342, 0.0
    %v1359 = vmax.f32 %v1343, 0.0
    %vm1364 = vcmask 1040384
    %v1365 = vrot.slane %v1356, 7
    %v1366 = vrot.slane %v1357, 7
    %v1367 = vsel %vm1364, %v1365, %v1366
    %v1368 = vrot.slane %v1358, 7
    %v1369 = vrot.slane %v1359, 7
    %v1370 = vsel %vm1364, %v1368, %v1369
    %1371 = vrot.lane.b32.xlu0 %v1365, 8
    %v1372 = vpop.permute.xlu0 %1371
    %1373 = vrot.lane.b32.xlu0 %v1367, 8
    %v1374 = vpop.permute.xlu0 %1373
    %1375 = vrot.lane.b32.xlu0 %v1366, 8
    %v1376 = vpop.permute.xlu0 %1375
    %1377 = vrot.lane.b32.xlu0 %v1368, 8
    %v1378 = vpop.permute.xlu0 %1377
    %1379 = vrot.lane.b32.xlu0 %v1370, 8
    %v1380 = vpop.permute.xlu0 %1379
    %1381 = vrot.lane.b32.xlu0 %v1369, 8
    %v1382 = vpop.permute.xlu0 %1381
    %v1389 = vadd.f32 %v1344, %v1372
    %v1390 = vadd.f32 %v1345, %v1372
    %v1391 = vadd.f32 %v1346, %v1374
    %v1392 = vadd.f32 %v1347, %v1374
    %v1393 = vadd.f32 %v1348, %v1376
    %v1394 = vadd.f32 %v1349, %v1376
    %v1395 = vadd.f32 %v1350, %v1378
    %v1396 = vadd.f32 %v1351, %v1378
    %v1397 = vadd.f32 %v1352, %v1380
    %v1398 = vadd.f32 %v1353, %v1380
    %v1399 = vadd.f32 %v1354, %v1382
    %v1400 = vadd.f32 %v1355, %v1382
    %1413 = vrot.lane.b32.xlu0 %v1389, 120
    %v1414 = vpop.permute.xlu0 %1413
    %1415 = vrot.lane.b32.xlu0 %v1390, 120
    %v1416 = vpop.permute.xlu0 %1415
    %1417 = vrot.lane.b32.xlu0 %v1391, 120
    %v1418 = vpop.permute.xlu0 %1417
    %1419 = vrot.lane.b32.xlu0 %v1392, 120
    %v1420 = vpop.permute.xlu0 %1419
    %1421 = vrot.lane.b32.xlu0 %v1393, 120
    %v1422 = vpop.permute.xlu0 %1421
    %1423 = vrot.lane.b32.xlu0 %v1394, 120
    %v1424 = vpop.permute.xlu0 %1423
    %1425 = vrot.lane.b32.xlu0 %v1395, 120
    %v1426 = vpop.permute.xlu0 %1425
    %1427 = vrot.lane.b32.xlu0 %v1396, 120
    %v1428 = vpop.permute.xlu0 %1427
    %1429 = vrot.lane.b32.xlu0 %v1397, 120
    %v1430 = vpop.permute.xlu0 %1429
    %1431 = vrot.lane.b32.xlu0 %v1398, 120
    %v1432 = vpop.permute.xlu0 %1431
    %1433 = vrot.lane.b32.xlu0 %v1399, 120
    %v1434 = vpop.permute.xlu0 %1433
    %1435 = vrot.lane.b32.xlu0 %v1400, 120
    %v1436 = vpop.permute.xlu0 %1435
    %v1437 = vsel %vm115, %v1414, %v1416
    %v1438 = vsel %vm115, %v1418, %v1420
    %v1439 = vsel %vm115, %v1422, %v1424
    %v1440 = vsel %vm115, %v1426, %v1428
    %v1441 = vsel %vm115, %v1430, %v1432
    %v1442 = vsel %vm115, %v1434, %v1436
    %1449 = vst [vmem:[#allocation6 - $0x1] sm:$0xfe] %v1437
    %1450 = vst [vmem:[#allocation6 + $0x7] sm:$0xff] %v1438
    %1451 = vst [vmem:[#allocation6 + $0xf] sm:$0x1] %v1439
    %1452 = vst [vmem:[#allocation6 + $0xf] sm:$0xfe] %v1440
    %1453 = vst [vmem:[#allocation6 + $0x17] sm:$0xff] %v1441
    %1454 = vst [vmem:[#allocation6 + $0x1f] sm:$0x1] %v1442
    // Predicated region
    $region50: #{tpu_custom_call.1} parent=1 // pred_check
      _
    $region51: #{tpu_custom_call.1} parent=1 // pred_check_branch
      %1456 = sbr.rel (0) target = $region53
    $region52: #{tpu_custom_call.1} parent=1 // pred_region
      %s1458 = ssub.s32 512, 512
      %1459 = vsyncadd [#allocation5], %s1458
      %s1460 = sshll.u32 [#allocation6], 4
      %s1461 = int_to_ptr.vmem [resolvable:$true] %s1460
      %1466 = dma.vmem_to_hbm [thread:$0]  %s1461, 512, %s11, [#allocation5], 128, 128, 8
    $region53: #{tpu_custom_call.1} parent=1 // pred_fallthru
      _
    // Predicated region
    $region54: #{tpu_custom_call.1} parent=1 // pred_check
      _
    $region55: #{tpu_custom_call.1} parent=1 // pred_check_branch
      %1468 = sbr.rel (0) target = $region57
    $region56: #{tpu_custom_call.1} parent=1 // pred_region
      %1469 = dma.done [#allocation5], 512
    $region57: #{tpu_custom_call.1} parent=1 // pred_fallthru
      _
    %1470 = vsyncpa [#allocation4], 1
    %1471 = vsyncpa [#allocation5], 1

</llo_original>
